<compile_context>
chip_gen: v7x
topology: tpu7x:2x2x1
jax: 0.10.0
libtpu: 0.0.40
codegen_flags: <defaults>
</compile_context>

<pallas_src>
import jax
import jax.numpy as jnp
from jax.experimental import pallas as pl
from jax.experimental.pallas import tpu as pltpu


def _round_up(x, m):
    return (x + m - 1) // m * m


# --------------------------------------------------------------------------
# Kernel 1: LSTM recurrence (single invocation, everything resident in VMEM).
# --------------------------------------------------------------------------
def make_lstm_recurrence_kernel(T, Bp, Hp):
    """x:(T*Bp,E), w_ih:(E,4Hp), w_hh:(Hp,4Hp), b:(1,4Hp) -> h_all:(T*Bp,Hp)."""

    def kernel(x_ref, w_ih_ref, w_hh_ref, b_ref, h_all_ref):
        # Hoisted input projection for ALL timesteps: one big MXU matmul,
        # bias broadcast hoisted out of the recurrence loop.
        xg = (jnp.dot(x_ref[...], w_ih_ref[...],
                      preferred_element_type=jnp.float32)
              + b_ref[...])                                   # (T*Bp, 4*Hp)
        w_hh = w_hh_ref[...]                                  # (Hp, 4*Hp)

        h = jnp.zeros((Bp, Hp), jnp.float32)
        c = jnp.zeros((Bp, Hp), jnp.float32)

        # T is small & static -> fully unrolled recurrence with static,
        # sublane-aligned slices (Bp % 8 == 0) and lane-aligned gate slices
        # (Hp % 128 == 0).  Only one MXU matmul per step remains on the
        # recurrent critical path.
        for t in range(T):
            g = xg[t * Bp:(t + 1) * Bp, :] + jnp.dot(
                h, w_hh, preferred_element_type=jnp.float32)   # (Bp, 4*Hp)
            i_g = jax.nn.sigmoid(g[:, 0:Hp])
            f_g = jax.nn.sigmoid(g[:, Hp:2 * Hp])
            g_g = jnp.tanh(g[:, 2 * Hp:3 * Hp])
            o_g = jax.nn.sigmoid(g[:, 3 * Hp:4 * Hp])
            c = f_g * c + i_g * g_g
            h = o_g * jnp.tanh(c)
            h_all_ref[t * Bp:(t + 1) * Bp, :] = h              # (Bp, Hp) store

    return kernel


# --------------------------------------------------------------------------
# Kernel 2: vocab projection (Linear head), fully parallel over (M, V) tiles.
# --------------------------------------------------------------------------
def head_kernel(h_ref, w_ref, b_ref, o_ref):
    o_ref[...] = (jnp.dot(h_ref[...], w_ref[...],
                          preferred_element_type=jnp.float32)
                  + b_ref[...])


# --------------------------------------------------------------------------
# Wrapper: embedding + feature prepend (glue), padding, two pallas_calls.
# --------------------------------------------------------------------------
def decoder_rnn_forward(features, captions, params):
    """features: (B, E) f32, captions: (B, S) int32 -> logits (B, S, V)."""
    emb = jnp.take(params["embedding"], captions[:, :-1], axis=0)   # (B,S-1,E)
    x = jnp.concatenate([features[:, None, :], emb], axis=1)        # (B, T, E)
    x = x.astype(jnp.float32)

    B, T, E = x.shape
    H = params["w_hh"].shape[1]
    V = params["w_out"].shape[0]

    Bp = _round_up(max(B, 8), 8)          # sublane alignment
    Hp = _round_up(H, 128)                # each gate slice = full 128-lane block
    Vp = _round_up(V, 128)                # lane-dense output stores

    # Time-major, batch-padded, flattened to (T*Bp, E): row = t*Bp + b.
    x_tm = jnp.transpose(x, (1, 0, 2))                              # (T, B, E)
    x_tm = jnp.pad(x_tm, ((0, 0), (0, Bp - B), (0, 0)))             # (T, Bp, E)
    x2d = x_tm.reshape(T * Bp, E)

    # Pad each PyTorch gate block [i|f|g|o] from width H to Hp with zeros.
    # Zero padding keeps padded hidden units identically zero:
    #   gates=0 -> i=f=o=0.5, g=tanh(0)=0 -> c_pad stays 0, h_pad stays 0.
    def pad_gate_cols(w):                                           # (r,4H)->(r,4Hp)
        r = w.shape[0]
        w4 = w.reshape(r, 4, H)
        w4 = jnp.pad(w4, ((0, 0), (0, 0), (0, Hp - H)))
        return w4.reshape(r, 4 * Hp)

    w_ih_T = jnp.transpose(params["w_ih"])                          # (E, 4H)
    w_hh_T = jnp.transpose(params["w_hh"])                          # (H, 4H)
    b = (params["b_ih"] + params["b_hh"])[None, :]                  # (1, 4H)

    w_ih_p = pad_gate_cols(w_ih_T)                                  # (E, 4Hp)
    w_hh_p = jnp.pad(pad_gate_cols(w_hh_T), ((0, Hp - H), (0, 0)))  # (Hp, 4Hp)
    b_p = pad_gate_cols(b)                                          # (1, 4Hp)

    w_out_p = jnp.pad(jnp.transpose(params["w_out"]),
                      ((0, Hp - H), (0, Vp - V)))                   # (Hp, Vp)
    b_out_p = jnp.pad(params["b_out"][None, :], ((0, 0), (0, Vp - V)))  # (1, Vp)

    # ---- Pallas kernel 1: recurrence (single grid step, VMEM-resident) ----
    h_all = pl.pallas_call(
        make_lstm_recurrence_kernel(T, Bp, Hp),
        out_shape=jax.ShapeDtypeStruct((T * Bp, Hp), jnp.float32),
        grid=(1,),
        in_specs=[
            pl.BlockSpec((T * Bp, E), lambda i: (0, 0)),            # x (all T)
            pl.BlockSpec((E, 4 * Hp), lambda i: (0, 0)),            # W_ih^T
            pl.BlockSpec((Hp, 4 * Hp), lambda i: (0, 0)),           # W_hh^T
            pl.BlockSpec((1, 4 * Hp), lambda i: (0, 0)),            # b_ih + b_hh
        ],
        out_specs=pl.BlockSpec((T * Bp, Hp), lambda i: (0, 0)),     # hidden states
        compiler_params=pltpu.CompilerParams(
            dimension_semantics=("arbitrary",)),                    # recurrence
    )(x2d, w_ih_p, w_hh_p, b_p)

    # ---- Pallas kernel 2: hoisted vocab head, parallel tiled matmul -------
    Mp = T * Bp
    tm = Mp                      # small here; tile M too for production sizes
    tn = 128
    logits_p = pl.pallas_call(
        head_kernel,
        out_shape=jax.ShapeDtypeStruct((Mp, Vp), jnp.float32),
        grid=(Mp // tm, Vp // tn),
        in_specs=[
            pl.BlockSpec((tm, Hp), lambda i, j: (i, 0)),            # hidden states
            pl.BlockSpec((Hp, tn), lambda i, j: (0, j)),            # W_out^T tile
            pl.BlockSpec((1, tn), lambda i, j: (0, j)),             # b_out tile
        ],
        out_specs=pl.BlockSpec((tm, tn), lambda i, j: (i, j)),
        compiler_params=pltpu.CompilerParams(
            dimension_semantics=("parallel", "parallel")),
    )(h_all, w_out_p, b_out_p)

    logits = logits_p.reshape(T, Bp, Vp)[:, :B, :V]                 # (T, B, V)
    return jnp.transpose(logits, (1, 0, 2))                         # (B, T, V)


# --------------------------------------------------------------------------
# Pure-JAX reference mirroring PyTorch DecoderRNN.forward.
# --------------------------------------------------------------------------
def reference_forward(features, captions, params):
    emb = jnp.take(params["embedding"], captions[:, :-1], axis=0)
    x = jnp.concatenate([features[:, None, :], emb], axis=1)        # (B, T, E)
    B, T, E = x.shape
    H = params["w_hh"].shape[1]
    w_ih_T = jnp.transpose(params["w_ih"])
    w_hh_T = jnp.transpose(params["w_hh"])
    b = params["b_ih"] + params["b_hh"]

    def step(carry, x_t):
        h, c = carry
        gates = x_t @ w_ih_T + h @ w_hh_T + b
        i = jax.nn.sigmoid(gates[:, 0:H])
        f = jax.nn.sigmoid(gates[:, H:2 * H])
        g = jnp.tanh(gates[:, 2 * H:3 * H])
        o = jax.nn.sigmoid(gates[:, 3 * H:4 * H])
        c = f * c + i * g
        h = o * jnp.tanh(c)
        return (h, c), h

    h0 = jnp.zeros((B, H), jnp.float32)
    c0 = jnp.zeros((B, H), jnp.float32)
    _, hs = jax.lax.scan(step, (h0, c0), jnp.transpose(x, (1, 0, 2)))
    logits = hs @ jnp.transpose(params["w_out"]) + params["b_out"]  # (T, B, V)
    return jnp.transpose(logits, (1, 0, 2))


def init_params(key, embed_size, hidden_size, vocab_size):
    ks = jax.random.split(key, 7)
    s = 0.1
    return {
        "embedding": s * jax.random.normal(ks[0], (vocab_size, embed_size), jnp.float32),
        "w_ih": s * jax.random.normal(ks[1], (4 * hidden_size, embed_size), jnp.float32),
        "w_hh": s * jax.random.normal(ks[2], (4 * hidden_size, hidden_size), jnp.float32),
        "b_ih": s * jax.random.normal(ks[3], (4 * hidden_size,), jnp.float32),
        "b_hh": s * jax.random.normal(ks[4], (4 * hidden_size,), jnp.float32),
        "w_out": s * jax.random.normal(ks[5], (vocab_size, hidden_size), jnp.float32),
        "b_out": s * jax.random.normal(ks[6], (vocab_size,), jnp.float32),
    }


if __name__ == "__main__":
    embed_size, hidden_size, vocab_size = 32, 32, 128
    batch, seq_len = 2, 8                    # T = seq_len (1 feature + 7 words)

    key = jax.random.PRNGKey(0)
    k_p, k_f, k_c = jax.random.split(key, 3)
    params = init_params(k_p, embed_size, hidden_size, vocab_size)

    features = jax.random.normal(k_f, (batch, embed_size), jnp.float32)
    captions = jax.random.randint(k_c, (batch, seq_len), 0, vocab_size, jnp.int32)

    out = jax.block_until_ready(decoder_rnn_forward(features, captions, params))
    ref = jax.block_until_ready(reference_forward(features, captions, params))

    assert out.shape == (batch, seq_len, vocab_size)
    assert jnp.allclose(out, ref, atol=1e-5, rtol=1e-5), "mismatch vs reference"

    print("KERNEL_OK")
</pallas_src>

<mosaic_0001>
module attributes {stable_mosaic.version = 11 : i64} {
  func.func @kernel(%arg0: i32, %arg1: memref<64x32xf32, #tpu.memory_space<vmem>>, %arg2: memref<32x512xf32, #tpu.memory_space<vmem>>, %arg3: memref<128x512xf32, #tpu.memory_space<vmem>>, %arg4: memref<1x512xf32, #tpu.memory_space<vmem>>, %arg5: memref<64x128xf32, #tpu.memory_space<vmem>>) attributes {dimension_semantics = [#tpu.dimension_semantics<arbitrary>], iteration_bounds = array<i64: 1>, scalar_prefetch = 0 : i64, scratch_operands = 0 : i64, tpu.core_type = #tpu.core_type<tc>, window_params = [{pipeline_mode = #tpu.pipeline_mode<synchronous>, transform_indices = @transform_0, window_bounds = array<i64: 64, 32>}, {pipeline_mode = #tpu.pipeline_mode<synchronous>, transform_indices = @transform_1, window_bounds = array<i64: 32, 512>}, {pipeline_mode = #tpu.pipeline_mode<synchronous>, transform_indices = @transform_2, window_bounds = array<i64: 128, 512>}, {pipeline_mode = #tpu.pipeline_mode<synchronous>, transform_indices = @transform_3, window_bounds = array<i64: 1, 512>}, {pipeline_mode = #tpu.pipeline_mode<synchronous>, transform_indices = @transform_4, window_bounds = array<i64: 64, 128>}]} {
    %c0 = arith.constant 0 : index
    %c0_0 = arith.constant 0 : index
    %0 = vector.load %arg1[%c0, %c0_0] : memref<64x32xf32, #tpu.memory_space<vmem>>, vector<64x32xf32>
    %c0_1 = arith.constant 0 : index
    %c0_2 = arith.constant 0 : index
    %1 = vector.load %arg2[%c0_1, %c0_2] : memref<32x512xf32, #tpu.memory_space<vmem>>, vector<32x512xf32>
    %cst = arith.constant dense<0.000000e+00> : vector<64x512xf32>
    %2 = tpu.matmul %0, %1, %cst {dimension_numbers = #tpu.dot_dimension_numbers<[1], [0], [0], [1], [0, 0, 1, 1], [], []>} : vector<64x32xf32>, vector<32x512xf32>, vector<64x512xf32> -> vector<64x512xf32>
    %c0_3 = arith.constant 0 : index
    %c0_4 = arith.constant 0 : index
    %3 = vector.load %arg4[%c0_3, %c0_4] : memref<1x512xf32, #tpu.memory_space<vmem>>, vector<1x512xf32>
    %4 = vector.broadcast %3 : vector<1x512xf32> to vector<64x512xf32>
    %5 = arith.addf %2, %4 : vector<64x512xf32>
    %c0_5 = arith.constant 0 : index
    %c0_6 = arith.constant 0 : index
    %6 = vector.load %arg3[%c0_5, %c0_6] : memref<128x512xf32, #tpu.memory_space<vmem>>, vector<128x512xf32>
    %cst_7 = arith.constant 0.000000e+00 : f32
    %7 = vector.broadcast %cst_7 : f32 to vector<8x128xf32>
    %cst_8 = arith.constant 0.000000e+00 : f32
    %8 = vector.broadcast %cst_8 : f32 to vector<8x128xf32>
    %9 = vector.extract_strided_slice %5 {offsets = [0, 0], sizes = [8, 512], strides = [1, 1]} : vector<64x512xf32> to vector<8x512xf32>
    %cst_9 = arith.constant dense<0.000000e+00> : vector<8x512xf32>
    %10 = tpu.matmul %7, %6, %cst_9 {dimension_numbers = #tpu.dot_dimension_numbers<[1], [0], [0], [1], [0, 0, 1, 1], [], []>} : vector<8x128xf32>, vector<128x512xf32>, vector<8x512xf32> -> vector<8x512xf32>
    %11 = arith.addf %9, %10 : vector<8x512xf32>
    %12 = vector.extract_strided_slice %11 {offsets = [0, 0], sizes = [8, 128], strides = [1, 1]} : vector<8x512xf32> to vector<8x128xf32>
    %13 = arith.negf %12 : vector<8x128xf32>
    %14 = math.exp %13 : vector<8x128xf32>
    %cst_10 = arith.constant 1.000000e+00 : f32
    %15 = vector.broadcast %cst_10 : f32 to vector<8x128xf32>
    %16 = arith.addf %15, %14 : vector<8x128xf32>
    %17 = arith.divf %15, %16 : vector<8x128xf32>
    %18 = vector.extract_strided_slice %11 {offsets = [0, 128], sizes = [8, 128], strides = [1, 1]} : vector<8x512xf32> to vector<8x128xf32>
    %19 = arith.negf %18 : vector<8x128xf32>
    %20 = math.exp %19 : vector<8x128xf32>
    %cst_11 = arith.constant 1.000000e+00 : f32
    %21 = vector.broadcast %cst_11 : f32 to vector<8x128xf32>
    %22 = arith.addf %21, %20 : vector<8x128xf32>
    %23 = arith.divf %21, %22 : vector<8x128xf32>
    %24 = vector.extract_strided_slice %11 {offsets = [0, 256], sizes = [8, 128], strides = [1, 1]} : vector<8x512xf32> to vector<8x128xf32>
    %25 = math.tanh %24 : vector<8x128xf32>
    %26 = vector.extract_strided_slice %11 {offsets = [0, 384], sizes = [8, 128], strides = [1, 1]} : vector<8x512xf32> to vector<8x128xf32>
    %27 = arith.negf %26 : vector<8x128xf32>
    %28 = math.exp %27 : vector<8x128xf32>
    %cst_12 = arith.constant 1.000000e+00 : f32
    %29 = vector.broadcast %cst_12 : f32 to vector<8x128xf32>
    %30 = arith.addf %29, %28 : vector<8x128xf32>
    %31 = arith.divf %29, %30 : vector<8x128xf32>
    %32 = arith.mulf %23, %8 : vector<8x128xf32>
    %33 = arith.mulf %17, %25 : vector<8x128xf32>
    %34 = arith.addf %32, %33 : vector<8x128xf32>
    %35 = math.tanh %34 : vector<8x128xf32>
    %36 = arith.mulf %31, %35 : vector<8x128xf32>
    %c0_13 = arith.constant 0 : index
    %c0_14 = arith.constant 0 : index
    %37 = vector.load %arg5[%c0_13, %c0_14] : memref<64x128xf32, #tpu.memory_space<vmem>>, vector<8x128xf32>
    tpu.vector_store %arg5[%c0_13, %c0_14], %36 {strides = array<i32>} : memref<64x128xf32, #tpu.memory_space<vmem>>, vector<8x128xf32>,
    %38 = vector.extract_strided_slice %5 {offsets = [8, 0], sizes = [8, 512], strides = [1, 1]} : vector<64x512xf32> to vector<8x512xf32>
    %cst_15 = arith.constant dense<0.000000e+00> : vector<8x512xf32>
    %39 = tpu.matmul %36, %6, %cst_15 {dimension_numbers = #tpu.dot_dimension_numbers<[1], [0], [0], [1], [0, 0, 1, 1], [], []>} : vector<8x128xf32>, vector<128x512xf32>, vector<8x512xf32> -> vector<8x512xf32>
    %40 = arith.addf %38, %39 : vector<8x512xf32>
    %41 = vector.extract_strided_slice %40 {offsets = [0, 0], sizes = [8, 128], strides = [1, 1]} : vector<8x512xf32> to vector<8x128xf32>
    %42 = arith.negf %41 : vector<8x128xf32>
    %43 = math.exp %42 : vector<8x128xf32>
    %cst_16 = arith.constant 1.000000e+00 : f32
    %44 = vector.broadcast %cst_16 : f32 to vector<8x128xf32>
    %45 = arith.addf %44, %43 : vector<8x128xf32>
    %46 = arith.divf %44, %45 : vector<8x128xf32>
    %47 = vector.extract_strided_slice %40 {offsets = [0, 128], sizes = [8, 128], strides = [1, 1]} : vector<8x512xf32> to vector<8x128xf32>
    %48 = arith.negf %47 : vector<8x128xf32>
    %49 = math.exp %48 : vector<8x128xf32>
    %cst_17 = arith.constant 1.000000e+00 : f32
    %50 = vector.broadcast %cst_17 : f32 to vector<8x128xf32>
    %51 = arith.addf %50, %49 : vector<8x128xf32>
    %52 = arith.divf %50, %51 : vector<8x128xf32>
    %53 = vector.extract_strided_slice %40 {offsets = [0, 256], sizes = [8, 128], strides = [1, 1]} : vector<8x512xf32> to vector<8x128xf32>
    %54 = math.tanh %53 : vector<8x128xf32>
    %55 = vector.extract_strided_slice %40 {offsets = [0, 384], sizes = [8, 128], strides = [1, 1]} : vector<8x512xf32> to vector<8x128xf32>
    %56 = arith.negf %55 : vector<8x128xf32>
    %57 = math.exp %56 : vector<8x128xf32>
    %cst_18 = arith.constant 1.000000e+00 : f32
    %58 = vector.broadcast %cst_18 : f32 to vector<8x128xf32>
    %59 = arith.addf %58, %57 : vector<8x128xf32>
    %60 = arith.divf %58, %59 : vector<8x128xf32>
    %61 = arith.mulf %52, %34 : vector<8x128xf32>
    %62 = arith.mulf %46, %54 : vector<8x128xf32>
    %63 = arith.addf %61, %62 : vector<8x128xf32>
    %64 = math.tanh %63 : vector<8x128xf32>
    %65 = arith.mulf %60, %64 : vector<8x128xf32>
    %c8 = arith.constant 8 : index
    %c0_19 = arith.constant 0 : index
    %66 = vector.load %arg5[%c8, %c0_19] : memref<64x128xf32, #tpu.memory_space<vmem>>, vector<8x128xf32>
    tpu.vector_store %arg5[%c8, %c0_19], %65 {strides = array<i32>} : memref<64x128xf32, #tpu.memory_space<vmem>>, vector<8x128xf32>,
    %67 = vector.extract_strided_slice %5 {offsets = [16, 0], sizes = [8, 512], strides = [1, 1]} : vector<64x512xf32> to vector<8x512xf32>
    %cst_20 = arith.constant dense<0.000000e+00> : vector<8x512xf32>
    %68 = tpu.matmul %65, %6, %cst_20 {dimension_numbers = #tpu.dot_dimension_numbers<[1], [0], [0], [1], [0, 0, 1, 1], [], []>} : vector<8x128xf32>, vector<128x512xf32>, vector<8x512xf32> -> vector<8x512xf32>
    %69 = arith.addf %67, %68 : vector<8x512xf32>
    %70 = vector.extract_strided_slice %69 {offsets = [0, 0], sizes = [8, 128], strides = [1, 1]} : vector<8x512xf32> to vector<8x128xf32>
    %71 = arith.negf %70 : vector<8x128xf32>
    %72 = math.exp %71 : vector<8x128xf32>
    %cst_21 = arith.constant 1.000000e+00 : f32
    %73 = vector.broadcast %cst_21 : f32 to vector<8x128xf32>
    %74 = arith.addf %73, %72 : vector<8x128xf32>
    %75 = arith.divf %73, %74 : vector<8x128xf32>
    %76 = vector.extract_strided_slice %69 {offsets = [0, 128], sizes = [8, 128], strides = [1, 1]} : vector<8x512xf32> to vector<8x128xf32>
    %77 = arith.negf %76 : vector<8x128xf32>
    %78 = math.exp %77 : vector<8x128xf32>
    %cst_22 = arith.constant 1.000000e+00 : f32
    %79 = vector.broadcast %cst_22 : f32 to vector<8x128xf32>
    %80 = arith.addf %79, %78 : vector<8x128xf32>
    %81 = arith.divf %79, %80 : vector<8x128xf32>
    %82 = vector.extract_strided_slice %69 {offsets = [0, 256], sizes = [8, 128], strides = [1, 1]} : vector<8x512xf32> to vector<8x128xf32>
    %83 = math.tanh %82 : vector<8x128xf32>
    %84 = vector.extract_strided_slice %69 {offsets = [0, 384], sizes = [8, 128], strides = [1, 1]} : vector<8x512xf32> to vector<8x128xf32>
    %85 = arith.negf %84 : vector<8x128xf32>
    %86 = math.exp %85 : vector<8x128xf32>
    %cst_23 = arith.constant 1.000000e+00 : f32
    %87 = vector.broadcast %cst_23 : f32 to vector<8x128xf32>
    %88 = arith.addf %87, %86 : vector<8x128xf32>
    %89 = arith.divf %87, %88 : vector<8x128xf32>
    %90 = arith.mulf %81, %63 : vector<8x128xf32>
    %91 = arith.mulf %75, %83 : vector<8x128xf32>
    %92 = arith.addf %90, %91 : vector<8x128xf32>
    %93 = math.tanh %92 : vector<8x128xf32>
    %94 = arith.mulf %89, %93 : vector<8x128xf32>
    %c16 = arith.constant 16 : index
    %c0_24 = arith.constant 0 : index
    %95 = vector.load %arg5[%c16, %c0_24] : memref<64x128xf32, #tpu.memory_space<vmem>>, vector<8x128xf32>
    tpu.vector_store %arg5[%c16, %c0_24], %94 {strides = array<i32>} : memref<64x128xf32, #tpu.memory_space<vmem>>, vector<8x128xf32>,
    %96 = vector.extract_strided_slice %5 {offsets = [24, 0], sizes = [8, 512], strides = [1, 1]} : vector<64x512xf32> to vector<8x512xf32>
    %cst_25 = arith.constant dense<0.000000e+00> : vector<8x512xf32>
    %97 = tpu.matmul %94, %6, %cst_25 {dimension_numbers = #tpu.dot_dimension_numbers<[1], [0], [0], [1], [0, 0, 1, 1], [], []>} : vector<8x128xf32>, vector<128x512xf32>, vector<8x512xf32> -> vector<8x512xf32>
    %98 = arith.addf %96, %97 : vector<8x512xf32>
    %99 = vector.extract_strided_slice %98 {offsets = [0, 0], sizes = [8, 128], strides = [1, 1]} : vector<8x512xf32> to vector<8x128xf32>
    %100 = arith.negf %99 : vector<8x128xf32>
    %101 = math.exp %100 : vector<8x128xf32>
    %cst_26 = arith.constant 1.000000e+00 : f32
    %102 = vector.broadcast %cst_26 : f32 to vector<8x128xf32>
    %103 = arith.addf %102, %101 : vector<8x128xf32>
    %104 = arith.divf %102, %103 : vector<8x128xf32>
    %105 = vector.extract_strided_slice %98 {offsets = [0, 128], sizes = [8, 128], strides = [1, 1]} : vector<8x512xf32> to vector<8x128xf32>
    %106 = arith.negf %105 : vector<8x128xf32>
    %107 = math.exp %106 : vector<8x128xf32>
    %cst_27 = arith.constant 1.000000e+00 : f32
    %108 = vector.broadcast %cst_27 : f32 to vector<8x128xf32>
    %109 = arith.addf %108, %107 : vector<8x128xf32>
    %110 = arith.divf %108, %109 : vector<8x128xf32>
    %111 = vector.extract_strided_slice %98 {offsets = [0, 256], sizes = [8, 128], strides = [1, 1]} : vector<8x512xf32> to vector<8x128xf32>
    %112 = math.tanh %111 : vector<8x128xf32>
    %113 = vector.extract_strided_slice %98 {offsets = [0, 384], sizes = [8, 128], strides = [1, 1]} : vector<8x512xf32> to vector<8x128xf32>
    %114 = arith.negf %113 : vector<8x128xf32>
    %115 = math.exp %114 : vector<8x128xf32>
    %cst_28 = arith.constant 1.000000e+00 : f32
    %116 = vector.broadcast %cst_28 : f32 to vector<8x128xf32>
    %117 = arith.addf %116, %115 : vector<8x128xf32>
    %118 = arith.divf %116, %117 : vector<8x128xf32>
    %119 = arith.mulf %110, %92 : vector<8x128xf32>
    %120 = arith.mulf %104, %112 : vector<8x128xf32>
    %121 = arith.addf %119, %120 : vector<8x128xf32>
    %122 = math.tanh %121 : vector<8x128xf32>
    %123 = arith.mulf %118, %122 : vector<8x128xf32>
    %c24 = arith.constant 24 : index
    %c0_29 = arith.constant 0 : index
    %124 = vector.load %arg5[%c24, %c0_29] : memref<64x128xf32, #tpu.memory_space<vmem>>, vector<8x128xf32>
    tpu.vector_store %arg5[%c24, %c0_29], %123 {strides = array<i32>} : memref<64x128xf32, #tpu.memory_space<vmem>>, vector<8x128xf32>,
    %125 = vector.extract_strided_slice %5 {offsets = [32, 0], sizes = [8, 512], strides = [1, 1]} : vector<64x512xf32> to vector<8x512xf32>
    %cst_30 = arith.constant dense<0.000000e+00> : vector<8x512xf32>
    %126 = tpu.matmul %123, %6, %cst_30 {dimension_numbers = #tpu.dot_dimension_numbers<[1], [0], [0], [1], [0, 0, 1, 1], [], []>} : vector<8x128xf32>, vector<128x512xf32>, vector<8x512xf32> -> vector<8x512xf32>
    %127 = arith.addf %125, %126 : vector<8x512xf32>
    %128 = vector.extract_strided_slice %127 {offsets = [0, 0], sizes = [8, 128], strides = [1, 1]} : vector<8x512xf32> to vector<8x128xf32>
    %129 = arith.negf %128 : vector<8x128xf32>
    %130 = math.exp %129 : vector<8x128xf32>
    %cst_31 = arith.constant 1.000000e+00 : f32
    %131 = vector.broadcast %cst_31 : f32 to vector<8x128xf32>
    %132 = arith.addf %131, %130 : vector<8x128xf32>
    %133 = arith.divf %131, %132 : vector<8x128xf32>
    %134 = vector.extract_strided_slice %127 {offsets = [0, 128], sizes = [8, 128], strides = [1, 1]} : vector<8x512xf32> to vector<8x128xf32>
    %135 = arith.negf %134 : vector<8x128xf32>
    %136 = math.exp %135 : vector<8x128xf32>
    %cst_32 = arith.constant 1.000000e+00 : f32
    %137 = vector.broadcast %cst_32 : f32 to vector<8x128xf32>
    %138 = arith.addf %137, %136 : vector<8x128xf32>
    %139 = arith.divf %137, %138 : vector<8x128xf32>
    %140 = vector.extract_strided_slice %127 {offsets = [0, 256], sizes = [8, 128], strides = [1, 1]} : vector<8x512xf32> to vector<8x128xf32>
    %141 = math.tanh %140 : vector<8x128xf32>
    %142 = vector.extract_strided_slice %127 {offsets = [0, 384], sizes = [8, 128], strides = [1, 1]} : vector<8x512xf32> to vector<8x128xf32>
    %143 = arith.negf %142 : vector<8x128xf32>
    %144 = math.exp %143 : vector<8x128xf32>
    %cst_33 = arith.constant 1.000000e+00 : f32
    %145 = vector.broadcast %cst_33 : f32 to vector<8x128xf32>
    %146 = arith.addf %145, %144 : vector<8x128xf32>
    %147 = arith.divf %145, %146 : vector<8x128xf32>
    %148 = arith.mulf %139, %121 : vector<8x128xf32>
    %149 = arith.mulf %133, %141 : vector<8x128xf32>
    %150 = arith.addf %148, %149 : vector<8x128xf32>
    %151 = math.tanh %150 : vector<8x128xf32>
    %152 = arith.mulf %147, %151 : vector<8x128xf32>
    %c32 = arith.constant 32 : index
    %c0_34 = arith.constant 0 : index
    %153 = vector.load %arg5[%c32, %c0_34] : memref<64x128xf32, #tpu.memory_space<vmem>>, vector<8x128xf32>
    tpu.vector_store %arg5[%c32, %c0_34], %152 {strides = array<i32>} : memref<64x128xf32, #tpu.memory_space<vmem>>, vector<8x128xf32>,
    %154 = vector.extract_strided_slice %5 {offsets = [40, 0], sizes = [8, 512], strides = [1, 1]} : vector<64x512xf32> to vector<8x512xf32>
    %cst_35 = arith.constant dense<0.000000e+00> : vector<8x512xf32>
    %155 = tpu.matmul %152, %6, %cst_35 {dimension_numbers = #tpu.dot_dimension_numbers<[1], [0], [0], [1], [0, 0, 1, 1], [], []>} : vector<8x128xf32>, vector<128x512xf32>, vector<8x512xf32> -> vector<8x512xf32>
    %156 = arith.addf %154, %155 : vector<8x512xf32>
    %157 = vector.extract_strided_slice %156 {offsets = [0, 0], sizes = [8, 128], strides = [1, 1]} : vector<8x512xf32> to vector<8x128xf32>
    %158 = arith.negf %157 : vector<8x128xf32>
    %159 = math.exp %158 : vector<8x128xf32>
    %cst_36 = arith.constant 1.000000e+00 : f32
    %160 = vector.broadcast %cst_36 : f32 to vector<8x128xf32>
    %161 = arith.addf %160, %159 : vector<8x128xf32>
    %162 = arith.divf %160, %161 : vector<8x128xf32>
    %163 = vector.extract_strided_slice %156 {offsets = [0, 128], sizes = [8, 128], strides = [1, 1]} : vector<8x512xf32> to vector<8x128xf32>
    %164 = arith.negf %163 : vector<8x128xf32>
    %165 = math.exp %164 : vector<8x128xf32>
    %cst_37 = arith.constant 1.000000e+00 : f32
    %166 = vector.broadcast %cst_37 : f32 to vector<8x128xf32>
    %167 = arith.addf %166, %165 : vector<8x128xf32>
    %168 = arith.divf %166, %167 : vector<8x128xf32>
    %169 = vector.extract_strided_slice %156 {offsets = [0, 256], sizes = [8, 128], strides = [1, 1]} : vector<8x512xf32> to vector<8x128xf32>
    %170 = math.tanh %169 : vector<8x128xf32>
    %171 = vector.extract_strided_slice %156 {offsets = [0, 384], sizes = [8, 128], strides = [1, 1]} : vector<8x512xf32> to vector<8x128xf32>
    %172 = arith.negf %171 : vector<8x128xf32>
    %173 = math.exp %172 : vector<8x128xf32>
    %cst_38 = arith.constant 1.000000e+00 : f32
    %174 = vector.broadcast %cst_38 : f32 to vector<8x128xf32>
    %175 = arith.addf %174, %173 : vector<8x128xf32>
    %176 = arith.divf %174, %175 : vector<8x128xf32>
    %177 = arith.mulf %168, %150 : vector<8x128xf32>
    %178 = arith.mulf %162, %170 : vector<8x128xf32>
    %179 = arith.addf %177, %178 : vector<8x128xf32>
    %180 = math.tanh %179 : vector<8x128xf32>
    %181 = arith.mulf %176, %180 : vector<8x128xf32>
    %c40 = arith.constant 40 : index
    %c0_39 = arith.constant 0 : index
    %182 = vector.load %arg5[%c40, %c0_39] : memref<64x128xf32, #tpu.memory_space<vmem>>, vector<8x128xf32>
    tpu.vector_store %arg5[%c40, %c0_39], %181 {strides = array<i32>} : memref<64x128xf32, #tpu.memory_space<vmem>>, vector<8x128xf32>,
    %183 = vector.extract_strided_slice %5 {offsets = [48, 0], sizes = [8, 512], strides = [1, 1]} : vector<64x512xf32> to vector<8x512xf32>
    %cst_40 = arith.constant dense<0.000000e+00> : vector<8x512xf32>
    %184 = tpu.matmul %181, %6, %cst_40 {dimension_numbers = #tpu.dot_dimension_numbers<[1], [0], [0], [1], [0, 0, 1, 1], [], []>} : vector<8x128xf32>, vector<128x512xf32>, vector<8x512xf32> -> vector<8x512xf32>
    %185 = arith.addf %183, %184 : vector<8x512xf32>
    %186 = vector.extract_strided_slice %185 {offsets = [0, 0], sizes = [8, 128], strides = [1, 1]} : vector<8x512xf32> to vector<8x128xf32>
    %187 = arith.negf %186 : vector<8x128xf32>
    %188 = math.exp %187 : vector<8x128xf32>
    %cst_41 = arith.constant 1.000000e+00 : f32
    %189 = vector.broadcast %cst_41 : f32 to vector<8x128xf32>
    %190 = arith.addf %189, %188 : vector<8x128xf32>
    %191 = arith.divf %189, %190 : vector<8x128xf32>
    %192 = vector.extract_strided_slice %185 {offsets = [0, 128], sizes = [8, 128], strides = [1, 1]} : vector<8x512xf32> to vector<8x128xf32>
    %193 = arith.negf %192 : vector<8x128xf32>
    %194 = math.exp %193 : vector<8x128xf32>
    %cst_42 = arith.constant 1.000000e+00 : f32
    %195 = vector.broadcast %cst_42 : f32 to vector<8x128xf32>
    %196 = arith.addf %195, %194 : vector<8x128xf32>
    %197 = arith.divf %195, %196 : vector<8x128xf32>
    %198 = vector.extract_strided_slice %185 {offsets = [0, 256], sizes = [8, 128], strides = [1, 1]} : vector<8x512xf32> to vector<8x128xf32>
    %199 = math.tanh %198 : vector<8x128xf32>
    %200 = vector.extract_strided_slice %185 {offsets = [0, 384], sizes = [8, 128], strides = [1, 1]} : vector<8x512xf32> to vector<8x128xf32>
    %201 = arith.negf %200 : vector<8x128xf32>
    %202 = math.exp %201 : vector<8x128xf32>
    %cst_43 = arith.constant 1.000000e+00 : f32
    %203 = vector.broadcast %cst_43 : f32 to vector<8x128xf32>
    %204 = arith.addf %203, %202 : vector<8x128xf32>
    %205 = arith.divf %203, %204 : vector<8x128xf32>
    %206 = arith.mulf %197, %179 : vector<8x128xf32>
    %207 = arith.mulf %191, %199 : vector<8x128xf32>
    %208 = arith.addf %206, %207 : vector<8x128xf32>
    %209 = math.tanh %208 : vector<8x128xf32>
    %210 = arith.mulf %205, %209 : vector<8x128xf32>
    %c48 = arith.constant 48 : index
    %c0_44 = arith.constant 0 : index
    %211 = vector.load %arg5[%c48, %c0_44] : memref<64x128xf32, #tpu.memory_space<vmem>>, vector<8x128xf32>
    tpu.vector_store %arg5[%c48, %c0_44], %210 {strides = array<i32>} : memref<64x128xf32, #tpu.memory_space<vmem>>, vector<8x128xf32>,
    %212 = vector.extract_strided_slice %5 {offsets = [56, 0], sizes = [8, 512], strides = [1, 1]} : vector<64x512xf32> to vector<8x512xf32>
    %cst_45 = arith.constant dense<0.000000e+00> : vector<8x512xf32>
    %213 = tpu.matmul %210, %6, %cst_45 {dimension_numbers = #tpu.dot_dimension_numbers<[1], [0], [0], [1], [0, 0, 1, 1], [], []>} : vector<8x128xf32>, vector<128x512xf32>, vector<8x512xf32> -> vector<8x512xf32>
    %214 = arith.addf %212, %213 : vector<8x512xf32>
    %215 = vector.extract_strided_slice %214 {offsets = [0, 0], sizes = [8, 128], strides = [1, 1]} : vector<8x512xf32> to vector<8x128xf32>
    %216 = arith.negf %215 : vector<8x128xf32>
    %217 = math.exp %216 : vector<8x128xf32>
    %cst_46 = arith.constant 1.000000e+00 : f32
    %218 = vector.broadcast %cst_46 : f32 to vector<8x128xf32>
    %219 = arith.addf %218, %217 : vector<8x128xf32>
    %220 = arith.divf %218, %219 : vector<8x128xf32>
    %221 = vector.extract_strided_slice %214 {offsets = [0, 128], sizes = [8, 128], strides = [1, 1]} : vector<8x512xf32> to vector<8x128xf32>
    %222 = arith.negf %221 : vector<8x128xf32>
    %223 = math.exp %222 : vector<8x128xf32>
    %cst_47 = arith.constant 1.000000e+00 : f32
    %224 = vector.broadcast %cst_47 : f32 to vector<8x128xf32>
    %225 = arith.addf %224, %223 : vector<8x128xf32>
    %226 = arith.divf %224, %225 : vector<8x128xf32>
    %227 = vector.extract_strided_slice %214 {offsets = [0, 256], sizes = [8, 128], strides = [1, 1]} : vector<8x512xf32> to vector<8x128xf32>
    %228 = math.tanh %227 : vector<8x128xf32>
    %229 = vector.extract_strided_slice %214 {offsets = [0, 384], sizes = [8, 128], strides = [1, 1]} : vector<8x512xf32> to vector<8x128xf32>
    %230 = arith.negf %229 : vector<8x128xf32>
    %231 = math.exp %230 : vector<8x128xf32>
    %cst_48 = arith.constant 1.000000e+00 : f32
    %232 = vector.broadcast %cst_48 : f32 to vector<8x128xf32>
    %233 = arith.addf %232, %231 : vector<8x128xf32>
    %234 = arith.divf %232, %233 : vector<8x128xf32>
    %235 = arith.mulf %226, %208 : vector<8x128xf32>
    %236 = arith.mulf %220, %228 : vector<8x128xf32>
    %237 = arith.addf %235, %236 : vector<8x128xf32>
    %238 = math.tanh %237 : vector<8x128xf32>
    %239 = arith.mulf %234, %238 : vector<8x128xf32>
    %c56 = arith.constant 56 : index
    %c0_49 = arith.constant 0 : index
    %240 = vector.load %arg5[%c56, %c0_49] : memref<64x128xf32, #tpu.memory_space<vmem>>, vector<8x128xf32>
    tpu.vector_store %arg5[%c56, %c0_49], %239 {strides = array<i32>} : memref<64x128xf32, #tpu.memory_space<vmem>>, vector<8x128xf32>,
    return
  }
  func.func @transform_0(%arg0: i32) -> (i32, i32) {
    %c0_i32 = arith.constant 0 : i32
    %c0_i32_0 = arith.constant 0 : i32
    %c0_i32_1 = arith.constant 0 : i32
    return %c0_i32, %c0_i32_0 : i32, i32
  }
  func.func @transform_1(%arg0: i32) -> (i32, i32) {
    %c0_i32 = arith.constant 0 : i32
    %c0_i32_0 = arith.constant 0 : i32
    %c0_i32_1 = arith.constant 0 : i32
    return %c0_i32, %c0_i32_0 : i32, i32
  }
  func.func @transform_2(%arg0: i32) -> (i32, i32) {
    %c0_i32 = arith.constant 0 : i32
    %c0_i32_0 = arith.constant 0 : i32
    %c0_i32_1 = arith.constant 0 : i32
    return %c0_i32, %c0_i32_0 : i32, i32
  }
  func.func @transform_3(%arg0: i32) -> (i32, i32) {
    %c0_i32 = arith.constant 0 : i32
    %c0_i32_0 = arith.constant 0 : i32
    %c0_i32_1 = arith.constant 0 : i32
    return %c0_i32, %c0_i32_0 : i32, i32
  }
  func.func @transform_4(%arg0: i32) -> (i32, i32) {
    %c0_i32 = arith.constant 0 : i32
    %c0_i32_0 = arith.constant 0 : i32
    %c0_i32_1 = arith.constant 0 : i32
    return %c0_i32, %c0_i32_0 : i32, i32
  }
}

</mosaic_0001>

<llo_original>
// kernel: tpu_custom_call.1
$region0: #{tpu_custom_call.1}
  #allocation0 [shape = 'u32[]', space=smem, size = 0x4, offset = 0x4, fixed_abs, tag = 'smem constant byte address 0x4 - core index']
  #allocation1 [shape = 'u32[144,128]{1,0:T(1,128)}', space=vmem, size = 0x12000, scoped, tag = 'internal scratch']
  %s0 = inlined_call_operand.vmem [shape: f32[64,32], index: 0, kind: input, shape index: {}]
  %s1 = inlined_call_operand.hbm [shape: f32[32,512], index: 1, kind: input, shape index: {}]
  %s2 = inlined_call_operand.hbm [shape: f32[128,512], index: 2, kind: input, shape index: {}]
  %s3 = inlined_call_operand.vmem [shape: f32[1,512], index: 3, kind: input, shape index: {}]
  %s4 = inlined_call_operand.hbm [shape: f32[64,128], index: 4, kind: output, shape index: {}]
  %s5 = sld [smem:[#allocation0]]
  $region34: #{tpu_custom_call.1} parent=0
    _
  %s7 = ssub.s32 1, %s5
  %s8 = scalar_select 0, %s7, %s5
  $region1: #{tpu_custom_call.1} parent=0
    #allocation2 [shape = 'u8[65536]{0}', space=vmem, size = 0x10000, scoped, tag = 'input window, operand 1, single buffered']
    #allocation3 [shape = 's32[1]{0}', space=sflag, size = 0x4, scoped, tag = 'scoped memory for tpu_custom_call.1']
    #allocation4 [shape = 's32[1]{0}', space=sflag, size = 0x4, scoped, tag = 'scoped memory for tpu_custom_call.1']
    #allocation5 [shape = 'u8[262144]{0}', space=vmem, size = 0x40000, scoped, tag = 'input window, operand 2, single buffered']
    #allocation6 [shape = 's32[1]{0}', space=sflag, size = 0x4, scoped, tag = 'scoped memory for tpu_custom_call.1']
    #allocation7 [shape = 'u8[32768]{0}', space=vmem, size = 0x8000, scoped, tag = 'output window, operand 0, single buffered']
    %9 = vsyncpa [#allocation3], 0
    %10 = vsyncpa [#allocation6], 0
    %11 = vsyncpa [#allocation4], 0
    // Predicated region
    $region2: #{tpu_custom_call.1} parent=1 // pred_check
      _
    $region3: #{tpu_custom_call.1} parent=1 // pred_check_branch
      %13 = sbr.rel (0) target = $region5
    $region4: #{tpu_custom_call.1} parent=1 // pred_region
      _
    $region5: #{tpu_custom_call.1} parent=1 // pred_fallthru
      _
    // Predicated region
    $region6: #{tpu_custom_call.1} parent=1 // pred_check
      _
    $region7: #{tpu_custom_call.1} parent=1 // pred_check_branch
      %15 = sbr.rel (0) target = $region9
    $region8: #{tpu_custom_call.1} parent=1 // pred_region
      %s17 = ssub.s32 2048, 2048
      %18 = vsyncadd [#allocation3], %s17
      %s19 = sshll.u32 [#allocation2], 4
      %s20 = int_to_ptr.vmem [resolvable:$true] %s19
      %25 = dma.hbm_to_vmem [thread:$0]  %s1, 2048, %s20, [#allocation3], 512, 512, 32
    $region9: #{tpu_custom_call.1} parent=1 // pred_fallthru
      _
    // Predicated region
    $region10: #{tpu_custom_call.1} parent=1 // pred_check
      _
    $region11: #{tpu_custom_call.1} parent=1 // pred_check_branch
      %27 = sbr.rel (0) target = $region13
    $region12: #{tpu_custom_call.1} parent=1 // pred_region
      %s29 = ssub.s32 8192, 8192
      %30 = vsyncadd [#allocation6], %s29
      %s31 = sshll.u32 [#allocation5], 4
      %s32 = int_to_ptr.vmem [resolvable:$true] %s31
      %37 = dma.hbm_to_vmem [thread:$0]  %s2, 8192, %s32, [#allocation6], 512, 512, 32
    $region13: #{tpu_custom_call.1} parent=1 // pred_fallthru
      _
    // Predicated region
    $region14: #{tpu_custom_call.1} parent=1 // pred_check
      _
    $region15: #{tpu_custom_call.1} parent=1 // pred_check_branch
      %39 = sbr.rel (0) target = $region17
    $region16: #{tpu_custom_call.1} parent=1 // pred_region
      _
    $region17: #{tpu_custom_call.1} parent=1 // pred_fallthru
      _
    // Predicated region
    $region18: #{tpu_custom_call.1} parent=1 // pred_check
      _
    $region19: #{tpu_custom_call.1} parent=1 // pred_check_branch
      %41 = sbr.rel (0) target = $region21
    $region20: #{tpu_custom_call.1} parent=1 // pred_region
      %42 = dma.done [#allocation3], 2048
    $region21: #{tpu_custom_call.1} parent=1 // pred_fallthru
      _
    // Predicated region
    $region22: #{tpu_custom_call.1} parent=1 // pred_check
      _
    $region23: #{tpu_custom_call.1} parent=1 // pred_check_branch
      %44 = sbr.rel (0) target = $region25
    $region24: #{tpu_custom_call.1} parent=1 // pred_region
      %45 = dma.done [#allocation6], 8192
    $region25: #{tpu_custom_call.1} parent=1 // pred_fallthru
      _
    %v46 = vld [vmem:[%s0] sm:$0xff]
    %v47 = vld [vmem:[%s0 + $0x8] sm:$0xff]
    %v48 = vld [vmem:[%s0 + $0x10] sm:$0xff]
    %v49 = vld [vmem:[%s0 + $0x18] sm:$0xff]
    %v50 = vld [vmem:[%s0 + $0x20] sm:$0xff]
    %v51 = vld [vmem:[%s0 + $0x28] sm:$0xff]
    %v52 = vld [vmem:[%s0 + $0x30] sm:$0xff]
    %v53 = vld [vmem:[%s0 + $0x38] sm:$0xff]
    %v54 = vld [vmem:[#allocation2] sm:$0xff]
    %v55 = vld [vmem:[#allocation2 + $0x8] sm:$0xff]
    %v56 = vld [vmem:[#allocation2 + $0x10] sm:$0xff]
    %v57 = vld [vmem:[#allocation2 + $0x18] sm:$0xff]
    %v58 = vld [vmem:[#allocation2 + $0x20] sm:$0xff]
    %v59 = vld [vmem:[#allocation2 + $0x28] sm:$0xff]
    %v60 = vld [vmem:[#allocation2 + $0x30] sm:$0xff]
    %v61 = vld [vmem:[#allocation2 + $0x38] sm:$0xff]
    %v62 = vld [vmem:[#allocation2 + $0x40] sm:$0xff]
    %v63 = vld [vmem:[#allocation2 + $0x48] sm:$0xff]
    %v64 = vld [vmem:[#allocation2 + $0x50] sm:$0xff]
    %v65 = vld [vmem:[#allocation2 + $0x58] sm:$0xff]
    %v66 = vld [vmem:[#allocation2 + $0x60] sm:$0xff]
    %v67 = vld [vmem:[#allocation2 + $0x68] sm:$0xff]
    %v68 = vld [vmem:[#allocation2 + $0x70] sm:$0xff]
    %v69 = vld [vmem:[#allocation2 + $0x78] sm:$0xff]
    %v70 = vld [vmem:[%s3] sm:$0xf]
    %v72 = vlaneseq
    %v73 = vshrl.u32 %v72, 7
    %v74 = vsub.s32 0, %v73
    %v75 = vrot.slane %v70, %v74
    %v76 = vlaneseq
    %v77 = vshrl.u32 %v76, 7
    %v78 = vsub.s32 1, %v77
    %v79 = vrot.slane %v70, %v78
    %v80 = vlaneseq
    %v81 = vshrl.u32 %v80, 7
    %v82 = vsub.s32 2, %v81
    %v83 = vrot.slane %v70, %v82
    %v84 = vlaneseq
    %v85 = vshrl.u32 %v84, 7
    %v86 = vsub.s32 3, %v85
    %v87 = vrot.slane %v70, %v86
    %vm92 = vcmask 261120
    %v94 = vsel %vm92, %v46, 0
    %v97 = vsel %vm92, %v47, 0
    %v100 = vsel %vm92, %v48, 0
    %v103 = vsel %vm92, %v49, 0
    %v106 = vsel %vm92, %v50, 0
    %v109 = vsel %vm92, %v51, 0
    %v112 = vsel %vm92, %v52, 0
    %v115 = vsel %vm92, %v53, 0
    %117 = vmatprep.subr.mxu0 %v55
    %118 = vmatpush1.msra.mxu0 %v54
    %119 = vmatprep.subr.mxu0 %v59
    %120 = vmatpush1.msra.mxu0 %v58
    %121 = vmatprep.subr.mxu0 %v63
    %122 = vmatpush1.msra.mxu0 %v62
    %123 = vmatprep.subr.mxu0 %v67
    %124 = vmatpush1.msra.mxu0 %v66
    %125 = vmatprep.subr.mxu0 0.0
    %126 = vmatpush1.msra.mxu0 0.0
    %127 = vmatprep.subr.mxu0 0.0
    %128 = vmatpush1.msra.mxu0 0.0
    %129 = vmatprep.subr.mxu0 0.0
    %130 = vmatpush1.msra.mxu0 0.0
    %131 = vmatprep.subr.mxu0 0.0
    %132 = vmatpush1.msra.mxu0 0.0
    %133 = vmatprep.subr.mxu0 0.0
    %134 = vmatpush1.msra.mxu0 0.0
    %135 = vmatprep.subr.mxu0 0.0
    %136 = vmatpush1.msra.mxu0 0.0
    %137 = vmatprep.subr.mxu0 0.0
    %138 = vmatpush1.msra.mxu0 0.0
    %139 = vmatprep.subr.mxu0 0.0
    %140 = vmatpush1.msra.mxu0 0.0
    %141 = vmatprep.subr.mxu0 0.0
    %142 = vmatpush1.msra.mxu0 0.0
    %143 = vmatprep.subr.mxu0 0.0
    %144 = vmatpush1.msra.mxu0 0.0
    %145 = vmatprep.subr.mxu0 0.0
    %146 = vmatpush1.msra.mxu0 0.0
    %147 = vmatprep.subr.mxu0 0.0
    %148 = vmatpush1.msra.mxu0 0.0
    %149 = vmatprep.subr.mxu0 0.0
    %150 = vmatpush1.msra.mxu0 0.0
    %151 = vmatprep.subr.mxu0 0.0
    %152 = vmatpush1.msra.mxu0 0.0
    %153 = vmatprep.subr.mxu0 0.0
    %154 = vmatpush1.msra.mxu0 0.0
    %155 = vmatprep.subr.mxu0 0.0
    %156 = vmatpush1.msra.mxu0 0.0
    %157 = vmatprep.subr.mxu0 0.0
    %158 = vmatpush1.msra.mxu0 0.0
    %159 = vmatprep.subr.mxu0 0.0
    %160 = vmatpush1.msra.mxu0 0.0
    %161 = vmatprep.subr.mxu0 0.0
    %162 = vmatpush1.msra.mxu0 0.0
    %163 = vmatprep.subr.mxu0 0.0
    %164 = vmatpush1.msra.mxu0 0.0
    %165 = vmatprep.subr.mxu0 0.0
    %166 = vmatpush1.msra.mxu0 0.0
    %167 = vmatprep.subr.mxu0 0.0
    %168 = vmatpush1.msra.mxu0 0.0
    %169 = vmatprep.subr.mxu0 0.0
    %170 = vmatpush1.msra.mxu0 0.0
    %171 = vmatprep.subr.mxu0 0.0
    %172 = vmatpush1.msra.mxu0 0.0
    %173 = vmatprep.subr.mxu0 0.0
    %174 = vmatpush1.msra.mxu0 0.0
    %175 = vmatprep.subr.mxu0 0.0
    %176 = vmatpush1.msra.mxu0 0.0
    %177 = vmatprep.subr.mxu0 0.0
    %178 = vmatpush1.msra.mxu0 0.0
    %179 = vmatprep.subr.mxu0 0.0
    %180 = vmatpush1.msra.mxu0 0.0
    %181 = vmatprep.mubr.f32.mxu0 0.0
    %182 = vmatmul.mubr.f32.gmra.mrb[0].mxu0 %v94
    %v183 = vpop.f32.mrb[0].mxu0
    %v184 = vadd.f32 %v75, %v183
    %v185 = vpop.f32.mrb[0].mxu0
    %v186 = vadd.f32 %v79, %v185
    %187 = vmatprep.mubr.f32.mxu0 0.0
    %188 = vmatmul.mubr.f32.gmra.mrb[0].mxu0 %v97
    %v189 = vpop.f32.mrb[0].mxu0
    %v190 = vadd.f32 %v75, %v189
    %v191 = vpop.f32.mrb[0].mxu0
    %v192 = vadd.f32 %v79, %v191
    %193 = vmatprep.mubr.f32.mxu0 0.0
    %194 = vmatmul.mubr.f32.gmra.mrb[0].mxu0 %v100
    %v195 = vpop.f32.mrb[0].mxu0
    %v196 = vadd.f32 %v75, %v195
    %v197 = vpop.f32.mrb[0].mxu0
    %v198 = vadd.f32 %v79, %v197
    %199 = vmatprep.mubr.f32.mxu0 0.0
    %200 = vmatmul.mubr.f32.gmra.mrb[0].mxu0 %v103
    %v201 = vpop.f32.mrb[0].mxu0
    %v202 = vadd.f32 %v75, %v201
    %v203 = vpop.f32.mrb[0].mxu0
    %v204 = vadd.f32 %v79, %v203
    %205 = vmatprep.mubr.f32.mxu0 0.0
    %206 = vmatmul.mubr.f32.gmra.mrb[0].mxu0 %v106
    %v207 = vpop.f32.mrb[0].mxu0
    %v208 = vadd.f32 %v75, %v207
    %v209 = vpop.f32.mrb[0].mxu0
    %v210 = vadd.f32 %v79, %v209
    %211 = vmatprep.mubr.f32.mxu0 0.0
    %212 = vmatmul.mubr.f32.gmra.mrb[0].mxu0 %v109
    %v213 = vpop.f32.mrb[0].mxu0
    %v214 = vadd.f32 %v75, %v213
    %v215 = vpop.f32.mrb[0].mxu0
    %v216 = vadd.f32 %v79, %v215
    %217 = vmatprep.mubr.f32.mxu0 0.0
    %218 = vmatmul.mubr.f32.gmra.mrb[0].mxu0 %v112
    %v219 = vpop.f32.mrb[0].mxu0
    %v220 = vadd.f32 %v75, %v219
    %v221 = vpop.f32.mrb[0].mxu0
    %v222 = vadd.f32 %v79, %v221
    %223 = vmatprep.mubr.f32.mxu0 0.0
    %224 = vmatmul.mubr.f32.gmra.mrb[0].mxu0 %v115
    %v225 = vpop.f32.mrb[0].mxu0
    %v226 = vadd.f32 %v75, %v225
    %v227 = vpop.f32.mrb[0].mxu0
    %v228 = vadd.f32 %v79, %v227
    %229 = vdwg.mxu0
    %230 = vmatprep.subr.mxu0 %v57
    %231 = vmatpush1.msra.mxu0 %v56
    %232 = vmatprep.subr.mxu0 %v61
    %233 = vmatpush1.msra.mxu0 %v60
    %234 = vmatprep.subr.mxu0 %v65
    %235 = vmatpush1.msra.mxu0 %v64
    %236 = vmatprep.subr.mxu0 %v69
    %237 = vmatpush1.msra.mxu0 %v68
    %238 = vmatprep.subr.mxu0 0.0
    %239 = vmatpush1.msra.mxu0 0.0
    %240 = vmatprep.subr.mxu0 0.0
    %241 = vmatpush1.msra.mxu0 0.0
    %242 = vmatprep.subr.mxu0 0.0
    %243 = vmatpush1.msra.mxu0 0.0
    %244 = vmatprep.subr.mxu0 0.0
    %245 = vmatpush1.msra.mxu0 0.0
    %246 = vmatprep.subr.mxu0 0.0
    %247 = vmatpush1.msra.mxu0 0.0
    %248 = vmatprep.subr.mxu0 0.0
    %249 = vmatpush1.msra.mxu0 0.0
    %250 = vmatprep.subr.mxu0 0.0
    %251 = vmatpush1.msra.mxu0 0.0
    %252 = vmatprep.subr.mxu0 0.0
    %253 = vmatpush1.msra.mxu0 0.0
    %254 = vmatprep.subr.mxu0 0.0
    %255 = vmatpush1.msra.mxu0 0.0
    %256 = vmatprep.subr.mxu0 0.0
    %257 = vmatpush1.msra.mxu0 0.0
    %258 = vmatprep.subr.mxu0 0.0
    %259 = vmatpush1.msra.mxu0 0.0
    %260 = vmatprep.subr.mxu0 0.0
    %261 = vmatpush1.msra.mxu0 0.0
    %262 = vmatprep.subr.mxu0 0.0
    %263 = vmatpush1.msra.mxu0 0.0
    %264 = vmatprep.subr.mxu0 0.0
    %265 = vmatpush1.msra.mxu0 0.0
    %266 = vmatprep.subr.mxu0 0.0
    %267 = vmatpush1.msra.mxu0 0.0
    %268 = vmatprep.subr.mxu0 0.0
    %269 = vmatpush1.msra.mxu0 0.0
    %270 = vmatprep.subr.mxu0 0.0
    %271 = vmatpush1.msra.mxu0 0.0
    %272 = vmatprep.subr.mxu0 0.0
    %273 = vmatpush1.msra.mxu0 0.0
    %274 = vmatprep.subr.mxu0 0.0
    %275 = vmatpush1.msra.mxu0 0.0
    %276 = vmatprep.subr.mxu0 0.0
    %277 = vmatpush1.msra.mxu0 0.0
    %278 = vmatprep.subr.mxu0 0.0
    %279 = vmatpush1.msra.mxu0 0.0
    %280 = vmatprep.subr.mxu0 0.0
    %281 = vmatpush1.msra.mxu0 0.0
    %282 = vmatprep.subr.mxu0 0.0
    %283 = vmatpush1.msra.mxu0 0.0
    %284 = vmatprep.subr.mxu0 0.0
    %285 = vmatpush1.msra.mxu0 0.0
    %286 = vmatprep.subr.mxu0 0.0
    %287 = vmatpush1.msra.mxu0 0.0
    %288 = vmatprep.subr.mxu0 0.0
    %289 = vmatpush1.msra.mxu0 0.0
    %290 = vmatprep.subr.mxu0 0.0
    %291 = vmatpush1.msra.mxu0 0.0
    %292 = vmatprep.subr.mxu0 0.0
    %293 = vmatpush1.msra.mxu0 0.0
    %294 = vmatprep.mubr.f32.mxu0 0.0
    %295 = vmatmul.mubr.f32.gmra.mrb[0].mxu0 %v94
    %v296 = vpop.f32.mrb[0].mxu0
    %v297 = vadd.f32 %v83, %v296
    %v298 = vpop.f32.mrb[0].mxu0
    %v299 = vadd.f32 %v87, %v298
    %300 = vmatprep.mubr.f32.mxu0 0.0
    %301 = vmatmul.mubr.f32.gmra.mrb[0].mxu0 %v97
    %v302 = vpop.f32.mrb[0].mxu0
    %v303 = vadd.f32 %v83, %v302
    %v304 = vpop.f32.mrb[0].mxu0
    %v305 = vadd.f32 %v87, %v304
    %306 = vmatprep.mubr.f32.mxu0 0.0
    %307 = vmatmul.mubr.f32.gmra.mrb[0].mxu0 %v100
    %v308 = vpop.f32.mrb[0].mxu0
    %v309 = vadd.f32 %v83, %v308
    %v310 = vpop.f32.mrb[0].mxu0
    %v311 = vadd.f32 %v87, %v310
    %312 = vmatprep.mubr.f32.mxu0 0.0
    %313 = vmatmul.mubr.f32.gmra.mrb[0].mxu0 %v103
    %v314 = vpop.f32.mrb[0].mxu0
    %v315 = vadd.f32 %v83, %v314
    %v316 = vpop.f32.mrb[0].mxu0
    %v317 = vadd.f32 %v87, %v316
    %318 = vmatprep.mubr.f32.mxu0 0.0
    %319 = vmatmul.mubr.f32.gmra.mrb[0].mxu0 %v106
    %v320 = vpop.f32.mrb[0].mxu0
    %v321 = vadd.f32 %v83, %v320
    %v322 = vpop.f32.mrb[0].mxu0
    %v323 = vadd.f32 %v87, %v322
    %324 = vmatprep.mubr.f32.mxu0 0.0
    %325 = vmatmul.mubr.f32.gmra.mrb[0].mxu0 %v109
    %v326 = vpop.f32.mrb[0].mxu0
    %v327 = vadd.f32 %v83, %v326
    %v328 = vpop.f32.mrb[0].mxu0
    %v329 = vadd.f32 %v87, %v328
    %330 = vmatprep.mubr.f32.mxu0 0.0
    %331 = vmatmul.mubr.f32.gmra.mrb[0].mxu0 %v112
    %v332 = vpop.f32.mrb[0].mxu0
    %v333 = vadd.f32 %v83, %v332
    %v334 = vpop.f32.mrb[0].mxu0
    %v335 = vadd.f32 %v87, %v334
    %336 = vmatprep.mubr.f32.mxu0 0.0
    %337 = vmatmul.mubr.f32.gmra.mrb[0].mxu0 %v115
    %v338 = vpop.f32.mrb[0].mxu0
    %v339 = vadd.f32 %v83, %v338
    %v340 = vpop.f32.mrb[0].mxu0
    %v341 = vadd.f32 %v87, %v340
    %342 = vdwg.mxu0
    %v343 = vld [vmem:[#allocation5] sm:$0xff]
    %v344 = vld [vmem:[#allocation5 + $0x8] sm:$0xff]
    %v345 = vld [vmem:[#allocation5 + $0x10] sm:$0xff]
    %v346 = vld [vmem:[#allocation5 + $0x18] sm:$0xff]
    %v347 = vld [vmem:[#allocation5 + $0x20] sm:$0xff]
    %v348 = vld [vmem:[#allocation5 + $0x28] sm:$0xff]
    %v349 = vld [vmem:[#allocation5 + $0x30] sm:$0xff]
    %v350 = vld [vmem:[#allocation5 + $0x38] sm:$0xff]
    %v351 = vld [vmem:[#allocation5 + $0x40] sm:$0xff]
    %v352 = vld [vmem:[#allocation5 + $0x48] sm:$0xff]
    %v353 = vld [vmem:[#allocation5 + $0x50] sm:$0xff]
    %v354 = vld [vmem:[#allocation5 + $0x58] sm:$0xff]
    %v355 = vld [vmem:[#allocation5 + $0x60] sm:$0xff]
    %v356 = vld [vmem:[#allocation5 + $0x68] sm:$0xff]
    %v357 = vld [vmem:[#allocation5 + $0x70] sm:$0xff]
    %v358 = vld [vmem:[#allocation5 + $0x78] sm:$0xff]
    %v359 = vld [vmem:[#allocation5 + $0x80] sm:$0xff]
    %v360 = vld [vmem:[#allocation5 + $0x88] sm:$0xff]
    %v361 = vld [vmem:[#allocation5 + $0x90] sm:$0xff]
    %v362 = vld [vmem:[#allocation5 + $0x98] sm:$0xff]
    %v363 = vld [vmem:[#allocation5 + $0xa0] sm:$0xff]
    %v364 = vld [vmem:[#allocation5 + $0xa8] sm:$0xff]
    %v365 = vld [vmem:[#allocation5 + $0xb0] sm:$0xff]
    %v366 = vld [vmem:[#allocation5 + $0xb8] sm:$0xff]
    %v367 = vld [vmem:[#allocation5 + $0xc0] sm:$0xff]
    %v368 = vld [vmem:[#allocation5 + $0xc8] sm:$0xff]
    %v369 = vld [vmem:[#allocation5 + $0xd0] sm:$0xff]
    %v370 = vld [vmem:[#allocation5 + $0xd8] sm:$0xff]
    %v371 = vld [vmem:[#allocation5 + $0xe0] sm:$0xff]
    %v372 = vld [vmem:[#allocation5 + $0xe8] sm:$0xff]
    %v373 = vld [vmem:[#allocation5 + $0xf0] sm:$0xff]
    %v374 = vld [vmem:[#allocation5 + $0xf8] sm:$0xff]
    %v375 = vld [vmem:[#allocation5 + $0x100] sm:$0xff]
    %v376 = vld [vmem:[#allocation5 + $0x108] sm:$0xff]
    %v377 = vld [vmem:[#allocation5 + $0x110] sm:$0xff]
    %v378 = vld [vmem:[#allocation5 + $0x118] sm:$0xff]
    %v379 = vld [vmem:[#allocation5 + $0x120] sm:$0xff]
    %v380 = vld [vmem:[#allocation5 + $0x128] sm:$0xff]
    %v381 = vld [vmem:[#allocation5 + $0x130] sm:$0xff]
    %v382 = vld [vmem:[#allocation5 + $0x138] sm:$0xff]
    %v383 = vld [vmem:[#allocation5 + $0x140] sm:$0xff]
    %v384 = vld [vmem:[#allocation5 + $0x148] sm:$0xff]
    %v385 = vld [vmem:[#allocation5 + $0x150] sm:$0xff]
    %v386 = vld [vmem:[#allocation5 + $0x158] sm:$0xff]
    %v387 = vld [vmem:[#allocation5 + $0x160] sm:$0xff]
    %v388 = vld [vmem:[#allocation5 + $0x168] sm:$0xff]
    %v389 = vld [vmem:[#allocation5 + $0x170] sm:$0xff]
    %v390 = vld [vmem:[#allocation5 + $0x178] sm:$0xff]
    %v391 = vld [vmem:[#allocation5 + $0x180] sm:$0xff]
    %v392 = vld [vmem:[#allocation5 + $0x188] sm:$0xff]
    %v393 = vld [vmem:[#allocation5 + $0x190] sm:$0xff]
    %v394 = vld [vmem:[#allocation5 + $0x198] sm:$0xff]
    %v395 = vld [vmem:[#allocation5 + $0x1a0] sm:$0xff]
    %v396 = vld [vmem:[#allocation5 + $0x1a8] sm:$0xff]
    %v397 = vld [vmem:[#allocation5 + $0x1b0] sm:$0xff]
    %v398 = vld [vmem:[#allocation5 + $0x1b8] sm:$0xff]
    %v399 = vld [vmem:[#allocation5 + $0x1c0] sm:$0xff]
    %v400 = vld [vmem:[#allocation5 + $0x1c8] sm:$0xff]
    %v401 = vld [vmem:[#allocation5 + $0x1d0] sm:$0xff]
    %v402 = vld [vmem:[#allocation5 + $0x1d8] sm:$0xff]
    %v403 = vld [vmem:[#allocation5 + $0x1e0] sm:$0xff]
    %v404 = vld [vmem:[#allocation5 + $0x1e8] sm:$0xff]
    %v405 = vld [vmem:[#allocation5 + $0x1f0] sm:$0xff]
    %v406 = vld [vmem:[#allocation5 + $0x1f8] sm:$0xff]
    %407 = vmatprep.subr.mxu0 %v344
    %408 = vmatpush1.msra.mxu0 %v343
    %409 = vmatprep.subr.mxu0 %v348
    %410 = vmatpush1.msra.mxu0 %v347
    %411 = vmatprep.subr.mxu0 %v352
    %412 = vmatpush1.msra.mxu0 %v351
    %413 = vmatprep.subr.mxu0 %v356
    %414 = vmatpush1.msra.mxu0 %v355
    %415 = vmatprep.subr.mxu0 %v360
    %416 = vmatpush1.msra.mxu0 %v359
    %417 = vmatprep.subr.mxu0 %v364
    %418 = vmatpush1.msra.mxu0 %v363
    %419 = vmatprep.subr.mxu0 %v368
    %420 = vmatpush1.msra.mxu0 %v367
    %421 = vmatprep.subr.mxu0 %v372
    %422 = vmatpush1.msra.mxu0 %v371
    %423 = vmatprep.subr.mxu0 %v376
    %424 = vmatpush1.msra.mxu0 %v375
    %425 = vmatprep.subr.mxu0 %v380
    %426 = vmatpush1.msra.mxu0 %v379
    %427 = vmatprep.subr.mxu0 %v384
    %428 = vmatpush1.msra.mxu0 %v383
    %429 = vmatprep.subr.mxu0 %v388
    %430 = vmatpush1.msra.mxu0 %v387
    %431 = vmatprep.subr.mxu0 %v392
    %432 = vmatpush1.msra.mxu0 %v391
    %433 = vmatprep.subr.mxu0 %v396
    %434 = vmatpush1.msra.mxu0 %v395
    %435 = vmatprep.subr.mxu0 %v400
    %436 = vmatpush1.msra.mxu0 %v399
    %437 = vmatprep.subr.mxu0 %v404
    %438 = vmatpush1.msra.mxu0 %v403
    %439 = vmatprep.subr.mxu0 0.0
    %440 = vmatpush1.msra.mxu0 0.0
    %441 = vmatprep.subr.mxu0 0.0
    %442 = vmatpush1.msra.mxu0 0.0
    %443 = vmatprep.subr.mxu0 0.0
    %444 = vmatpush1.msra.mxu0 0.0
    %445 = vmatprep.subr.mxu0 0.0
    %446 = vmatpush1.msra.mxu0 0.0
    %447 = vmatprep.subr.mxu0 0.0
    %448 = vmatpush1.msra.mxu0 0.0
    %449 = vmatprep.subr.mxu0 0.0
    %450 = vmatpush1.msra.mxu0 0.0
    %451 = vmatprep.subr.mxu0 0.0
    %452 = vmatpush1.msra.mxu0 0.0
    %453 = vmatprep.subr.mxu0 0.0
    %454 = vmatpush1.msra.mxu0 0.0
    %455 = vmatprep.subr.mxu0 0.0
    %456 = vmatpush1.msra.mxu0 0.0
    %457 = vmatprep.subr.mxu0 0.0
    %458 = vmatpush1.msra.mxu0 0.0
    %459 = vmatprep.subr.mxu0 0.0
    %460 = vmatpush1.msra.mxu0 0.0
    %461 = vmatprep.subr.mxu0 0.0
    %462 = vmatpush1.msra.mxu0 0.0
    %463 = vmatprep.subr.mxu0 0.0
    %464 = vmatpush1.msra.mxu0 0.0
    %465 = vmatprep.subr.mxu0 0.0
    %466 = vmatpush1.msra.mxu0 0.0
    %467 = vmatprep.subr.mxu0 0.0
    %468 = vmatpush1.msra.mxu0 0.0
    %469 = vmatprep.subr.mxu0 0.0
    %470 = vmatpush1.msra.mxu0 0.0
    %471 = vmatprep.mubr.f32.mxu0 0.0
    %472 = vmatmul.mubr.f32.gmra.mrb[0].mxu0 0.0
    %v473 = vpop.f32.mrb[0].mxu0
    %v474 = vadd.f32 0.0, %v473
    %v475 = vpop.f32.mrb[0].mxu0
    %v476 = vadd.f32 0.0, %v475
    %477 = vdwg.mxu0
    %478 = vmatprep.subr.mxu0 %v346
    %479 = vmatpush1.msra.mxu0 %v345
    %480 = vmatprep.subr.mxu0 %v350
    %481 = vmatpush1.msra.mxu0 %v349
    %482 = vmatprep.subr.mxu0 %v354
    %483 = vmatpush1.msra.mxu0 %v353
    %484 = vmatprep.subr.mxu0 %v358
    %485 = vmatpush1.msra.mxu0 %v357
    %486 = vmatprep.subr.mxu0 %v362
    %487 = vmatpush1.msra.mxu0 %v361
    %488 = vmatprep.subr.mxu0 %v366
    %489 = vmatpush1.msra.mxu0 %v365
    %490 = vmatprep.subr.mxu0 %v370
    %491 = vmatpush1.msra.mxu0 %v369
    %492 = vmatprep.subr.mxu0 %v374
    %493 = vmatpush1.msra.mxu0 %v373
    %494 = vmatprep.subr.mxu0 %v378
    %495 = vmatpush1.msra.mxu0 %v377
    %496 = vmatprep.subr.mxu0 %v382
    %497 = vmatpush1.msra.mxu0 %v381
    %498 = vmatprep.subr.mxu0 %v386
    %499 = vmatpush1.msra.mxu0 %v385
    %500 = vmatprep.subr.mxu0 %v390
    %501 = vmatpush1.msra.mxu0 %v389
    %502 = vmatprep.subr.mxu0 %v394
    %503 = vmatpush1.msra.mxu0 %v393
    %504 = vmatprep.subr.mxu0 %v398
    %505 = vmatpush1.msra.mxu0 %v397
    %506 = vmatprep.subr.mxu0 %v402
    %507 = vmatpush1.msra.mxu0 %v401
    %508 = vmatprep.subr.mxu0 %v406
    %509 = vmatpush1.msra.mxu0 %v405
    %510 = vmatprep.subr.mxu0 0.0
    %511 = vmatpush1.msra.mxu0 0.0
    %512 = vmatprep.subr.mxu0 0.0
    %513 = vmatpush1.msra.mxu0 0.0
    %514 = vmatprep.subr.mxu0 0.0
    %515 = vmatpush1.msra.mxu0 0.0
    %516 = vmatprep.subr.mxu0 0.0
    %517 = vmatpush1.msra.mxu0 0.0
    %518 = vmatprep.subr.mxu0 0.0
    %519 = vmatpush1.msra.mxu0 0.0
    %520 = vmatprep.subr.mxu0 0.0
    %521 = vmatpush1.msra.mxu0 0.0
    %522 = vmatprep.subr.mxu0 0.0
    %523 = vmatpush1.msra.mxu0 0.0
    %524 = vmatprep.subr.mxu0 0.0
    %525 = vmatpush1.msra.mxu0 0.0
    %526 = vmatprep.subr.mxu0 0.0
    %527 = vmatpush1.msra.mxu0 0.0
    %528 = vmatprep.subr.mxu0 0.0
    %529 = vmatpush1.msra.mxu0 0.0
    %530 = vmatprep.subr.mxu0 0.0
    %531 = vmatpush1.msra.mxu0 0.0
    %532 = vmatprep.subr.mxu0 0.0
    %533 = vmatpush1.msra.mxu0 0.0
    %534 = vmatprep.subr.mxu0 0.0
    %535 = vmatpush1.msra.mxu0 0.0
    %536 = vmatprep.subr.mxu0 0.0
    %537 = vmatpush1.msra.mxu0 0.0
    %538 = vmatprep.subr.mxu0 0.0
    %539 = vmatpush1.msra.mxu0 0.0
    %540 = vmatprep.subr.mxu0 0.0
    %541 = vmatpush1.msra.mxu0 0.0
    %542 = vmatprep.mubr.f32.mxu0 0.0
    %543 = vmatmul.mubr.f32.gmra.mrb[0].mxu0 0.0
    %v544 = vpop.f32.mrb[0].mxu0
    %v545 = vadd.f32 0.0, %v544
    %v546 = vpop.f32.mrb[0].mxu0
    %v547 = vadd.f32 0.0, %v546
    %548 = vdwg.mxu0
    %v549 = vadd.f32 %v184, %v474
    %v550 = vadd.f32 %v186, %v476
    %v551 = vadd.f32 %v297, %v545
    %v552 = vadd.f32 %v299, %v547
    %v553 = vxor.u32 %v549, 2147483648
    %v554 = vmul.f32 %v553, 1.442695
    %v555 = vpow.pop %v554
    %v556 = vadd.f32 %v555, 1.0
    %v557 = vrcp.pop %v556
    %v558 = vmul.f32 1.0, %v557
    %v559 = vxor.u32 %v550, 2147483648
    %v560 = vmul.f32 %v559, 1.442695
    %v561 = vpow.pop %v560
    %v562 = vadd.f32 %v561, 1.0
    %v563 = vrcp.pop %v562
    %v564 = vmul.f32 1.0, %v563
    %v565 = vtanh.pop %v551
    %v566 = vxor.u32 %v552, 2147483648
    %v567 = vmul.f32 %v566, 1.442695
    %v568 = vpow.pop %v567
    %v569 = vadd.f32 %v568, 1.0
    %v570 = vrcp.pop %v569
    %v571 = vmul.f32 1.0, %v570
    %v572 = vmul.f32 %v564, 0.0
    %v573 = vmul.f32 %v558, %v565
    %v574 = vadd.f32 %v572, %v573
    %v575 = vtanh.pop %v574
    %v576 = vmul.f32 %v571, %v575
    %577 = vst [vmem:[#allocation7] sm:$0xff] %v576
    %578 = vmatprep.subr.mxu0 %v344
    %579 = vmatpush1.msra.mxu0 %v343
    %580 = vmatprep.subr.mxu0 %v348
    %581 = vmatpush1.msra.mxu0 %v347
    %582 = vmatprep.subr.mxu0 %v352
    %583 = vmatpush1.msra.mxu0 %v351
    %584 = vmatprep.subr.mxu0 %v356
    %585 = vmatpush1.msra.mxu0 %v355
    %586 = vmatprep.subr.mxu0 %v360
    %587 = vmatpush1.msra.mxu0 %v359
    %588 = vmatprep.subr.mxu0 %v364
    %589 = vmatpush1.msra.mxu0 %v363
    %590 = vmatprep.subr.mxu0 %v368
    %591 = vmatpush1.msra.mxu0 %v367
    %592 = vmatprep.subr.mxu0 %v372
    %593 = vmatpush1.msra.mxu0 %v371
    %594 = vmatprep.subr.mxu0 %v376
    %595 = vmatpush1.msra.mxu0 %v375
    %596 = vmatprep.subr.mxu0 %v380
    %597 = vmatpush1.msra.mxu0 %v379
    %598 = vmatprep.subr.mxu0 %v384
    %599 = vmatpush1.msra.mxu0 %v383
    %600 = vmatprep.subr.mxu0 %v388
    %601 = vmatpush1.msra.mxu0 %v387
    %602 = vmatprep.subr.mxu0 %v392
    %603 = vmatpush1.msra.mxu0 %v391
    %604 = vmatprep.subr.mxu0 %v396
    %605 = vmatpush1.msra.mxu0 %v395
    %606 = vmatprep.subr.mxu0 %v400
    %607 = vmatpush1.msra.mxu0 %v399
    %608 = vmatprep.subr.mxu0 %v404
    %609 = vmatpush1.msra.mxu0 %v403
    %610 = vmatprep.subr.mxu0 0.0
    %611 = vmatpush1.msra.mxu0 0.0
    %612 = vmatprep.subr.mxu0 0.0
    %613 = vmatpush1.msra.mxu0 0.0
    %614 = vmatprep.subr.mxu0 0.0
    %615 = vmatpush1.msra.mxu0 0.0
    %616 = vmatprep.subr.mxu0 0.0
    %617 = vmatpush1.msra.mxu0 0.0
    %618 = vmatprep.subr.mxu0 0.0
    %619 = vmatpush1.msra.mxu0 0.0
    %620 = vmatprep.subr.mxu0 0.0
    %621 = vmatpush1.msra.mxu0 0.0
    %622 = vmatprep.subr.mxu0 0.0
    %623 = vmatpush1.msra.mxu0 0.0
    %624 = vmatprep.subr.mxu0 0.0
    %625 = vmatpush1.msra.mxu0 0.0
    %626 = vmatprep.subr.mxu0 0.0
    %627 = vmatpush1.msra.mxu0 0.0
    %628 = vmatprep.subr.mxu0 0.0
    %629 = vmatpush1.msra.mxu0 0.0
    %630 = vmatprep.subr.mxu0 0.0
    %631 = vmatpush1.msra.mxu0 0.0
    %632 = vmatprep.subr.mxu0 0.0
    %633 = vmatpush1.msra.mxu0 0.0
    %634 = vmatprep.subr.mxu0 0.0
    %635 = vmatpush1.msra.mxu0 0.0
    %636 = vmatprep.subr.mxu0 0.0
    %637 = vmatpush1.msra.mxu0 0.0
    %638 = vmatprep.subr.mxu0 0.0
    %639 = vmatpush1.msra.mxu0 0.0
    %640 = vmatprep.subr.mxu0 0.0
    %641 = vmatpush1.msra.mxu0 0.0
    %642 = vmatprep.mubr.f32.mxu0 0.0
    %643 = vmatmul.mubr.f32.gmra.mrb[0].mxu0 %v576
    %v644 = vpop.f32.mrb[0].mxu0
    %v645 = vadd.f32 0.0, %v644
    %v646 = vpop.f32.mrb[0].mxu0
    %v647 = vadd.f32 0.0, %v646
    %648 = vdwg.mxu0
    %649 = vmatprep.subr.mxu0 %v346
    %650 = vmatpush1.msra.mxu0 %v345
    %651 = vmatprep.subr.mxu0 %v350
    %652 = vmatpush1.msra.mxu0 %v349
    %653 = vmatprep.subr.mxu0 %v354
    %654 = vmatpush1.msra.mxu0 %v353
    %655 = vmatprep.subr.mxu0 %v358
    %656 = vmatpush1.msra.mxu0 %v357
    %657 = vmatprep.subr.mxu0 %v362
    %658 = vmatpush1.msra.mxu0 %v361
    %659 = vmatprep.subr.mxu0 %v366
    %660 = vmatpush1.msra.mxu0 %v365
    %661 = vmatprep.subr.mxu0 %v370
    %662 = vmatpush1.msra.mxu0 %v369
    %663 = vmatprep.subr.mxu0 %v374
    %664 = vmatpush1.msra.mxu0 %v373
    %665 = vmatprep.subr.mxu0 %v378
    %666 = vmatpush1.msra.mxu0 %v377
    %667 = vmatprep.subr.mxu0 %v382
    %668 = vmatpush1.msra.mxu0 %v381
    %669 = vmatprep.subr.mxu0 %v386
    %670 = vmatpush1.msra.mxu0 %v385
    %671 = vmatprep.subr.mxu0 %v390
    %672 = vmatpush1.msra.mxu0 %v389
    %673 = vmatprep.subr.mxu0 %v394
    %674 = vmatpush1.msra.mxu0 %v393
    %675 = vmatprep.subr.mxu0 %v398
    %676 = vmatpush1.msra.mxu0 %v397
    %677 = vmatprep.subr.mxu0 %v402
    %678 = vmatpush1.msra.mxu0 %v401
    %679 = vmatprep.subr.mxu0 %v406
    %680 = vmatpush1.msra.mxu0 %v405
    %681 = vmatprep.subr.mxu0 0.0
    %682 = vmatpush1.msra.mxu0 0.0
    %683 = vmatprep.subr.mxu0 0.0
    %684 = vmatpush1.msra.mxu0 0.0
    %685 = vmatprep.subr.mxu0 0.0
    %686 = vmatpush1.msra.mxu0 0.0
    %687 = vmatprep.subr.mxu0 0.0
    %688 = vmatpush1.msra.mxu0 0.0
    %689 = vmatprep.subr.mxu0 0.0
    %690 = vmatpush1.msra.mxu0 0.0
    %691 = vmatprep.subr.mxu0 0.0
    %692 = vmatpush1.msra.mxu0 0.0
    %693 = vmatprep.subr.mxu0 0.0
    %694 = vmatpush1.msra.mxu0 0.0
    %695 = vmatprep.subr.mxu0 0.0
    %696 = vmatpush1.msra.mxu0 0.0
    %697 = vmatprep.subr.mxu0 0.0
    %698 = vmatpush1.msra.mxu0 0.0
    %699 = vmatprep.subr.mxu0 0.0
    %700 = vmatpush1.msra.mxu0 0.0
    %701 = vmatprep.subr.mxu0 0.0
    %702 = vmatpush1.msra.mxu0 0.0
    %703 = vmatprep.subr.mxu0 0.0
    %704 = vmatpush1.msra.mxu0 0.0
    %705 = vmatprep.subr.mxu0 0.0
    %706 = vmatpush1.msra.mxu0 0.0
    %707 = vmatprep.subr.mxu0 0.0
    %708 = vmatpush1.msra.mxu0 0.0
    %709 = vmatprep.subr.mxu0 0.0
    %710 = vmatpush1.msra.mxu0 0.0
    %711 = vmatprep.subr.mxu0 0.0
    %712 = vmatpush1.msra.mxu0 0.0
    %713 = vmatprep.mubr.f32.mxu0 0.0
    %714 = vmatmul.mubr.f32.gmra.mrb[0].mxu0 %v576
    %v715 = vpop.f32.mrb[0].mxu0
    %v716 = vadd.f32 0.0, %v715
    %v717 = vpop.f32.mrb[0].mxu0
    %v718 = vadd.f32 0.0, %v717
    %719 = vdwg.mxu0
    %v720 = vadd.f32 %v190, %v645
    %v721 = vadd.f32 %v192, %v647
    %v722 = vadd.f32 %v303, %v716
    %v723 = vadd.f32 %v305, %v718
    %v724 = vxor.u32 %v720, 2147483648
    %v725 = vmul.f32 %v724, 1.442695
    %v726 = vpow.pop %v725
    %v727 = vadd.f32 %v726, 1.0
    %v728 = vrcp.pop %v727
    %v729 = vmul.f32 1.0, %v728
    %v730 = vxor.u32 %v721, 2147483648
    %v731 = vmul.f32 %v730, 1.442695
    %v732 = vpow.pop %v731
    %v733 = vadd.f32 %v732, 1.0
    %v734 = vrcp.pop %v733
    %v735 = vmul.f32 1.0, %v734
    %v736 = vtanh.pop %v722
    %v737 = vxor.u32 %v723, 2147483648
    %v738 = vmul.f32 %v737, 1.442695
    %v739 = vpow.pop %v738
    %v740 = vadd.f32 %v739, 1.0
    %v741 = vrcp.pop %v740
    %v742 = vmul.f32 1.0, %v741
    %v743 = vmul.f32 %v735, %v574
    %v744 = vmul.f32 %v729, %v736
    %v745 = vadd.f32 %v743, %v744
    %v746 = vtanh.pop %v745
    %v747 = vmul.f32 %v742, %v746
    %748 = vst [vmem:[#allocation7 + $0x8] sm:$0xff] %v747
    %749 = vmatprep.subr.mxu0 %v344
    %750 = vmatpush1.msra.mxu0 %v343
    %751 = vmatprep.subr.mxu0 %v348
    %752 = vmatpush1.msra.mxu0 %v347
    %753 = vmatprep.subr.mxu0 %v352
    %754 = vmatpush1.msra.mxu0 %v351
    %755 = vmatprep.subr.mxu0 %v356
    %756 = vmatpush1.msra.mxu0 %v355
    %757 = vmatprep.subr.mxu0 %v360
    %758 = vmatpush1.msra.mxu0 %v359
    %759 = vmatprep.subr.mxu0 %v364
    %760 = vmatpush1.msra.mxu0 %v363
    %761 = vmatprep.subr.mxu0 %v368
    %762 = vmatpush1.msra.mxu0 %v367
    %763 = vmatprep.subr.mxu0 %v372
    %764 = vmatpush1.msra.mxu0 %v371
    %765 = vmatprep.subr.mxu0 %v376
    %766 = vmatpush1.msra.mxu0 %v375
    %767 = vmatprep.subr.mxu0 %v380
    %768 = vmatpush1.msra.mxu0 %v379
    %769 = vmatprep.subr.mxu0 %v384
    %770 = vmatpush1.msra.mxu0 %v383
    %771 = vmatprep.subr.mxu0 %v388
    %772 = vmatpush1.msra.mxu0 %v387
    %773 = vmatprep.subr.mxu0 %v392
    %774 = vmatpush1.msra.mxu0 %v391
    %775 = vmatprep.subr.mxu0 %v396
    %776 = vmatpush1.msra.mxu0 %v395
    %777 = vmatprep.subr.mxu0 %v400
    %778 = vmatpush1.msra.mxu0 %v399
    %779 = vmatprep.subr.mxu0 %v404
    %780 = vmatpush1.msra.mxu0 %v403
    %781 = vmatprep.subr.mxu0 0.0
    %782 = vmatpush1.msra.mxu0 0.0
    %783 = vmatprep.subr.mxu0 0.0
    %784 = vmatpush1.msra.mxu0 0.0
    %785 = vmatprep.subr.mxu0 0.0
    %786 = vmatpush1.msra.mxu0 0.0
    %787 = vmatprep.subr.mxu0 0.0
    %788 = vmatpush1.msra.mxu0 0.0
    %789 = vmatprep.subr.mxu0 0.0
    %790 = vmatpush1.msra.mxu0 0.0
    %791 = vmatprep.subr.mxu0 0.0
    %792 = vmatpush1.msra.mxu0 0.0
    %793 = vmatprep.subr.mxu0 0.0
    %794 = vmatpush1.msra.mxu0 0.0
    %795 = vmatprep.subr.mxu0 0.0
    %796 = vmatpush1.msra.mxu0 0.0
    %797 = vmatprep.subr.mxu0 0.0
    %798 = vmatpush1.msra.mxu0 0.0
    %799 = vmatprep.subr.mxu0 0.0
    %800 = vmatpush1.msra.mxu0 0.0
    %801 = vmatprep.subr.mxu0 0.0
    %802 = vmatpush1.msra.mxu0 0.0
    %803 = vmatprep.subr.mxu0 0.0
    %804 = vmatpush1.msra.mxu0 0.0
    %805 = vmatprep.subr.mxu0 0.0
    %806 = vmatpush1.msra.mxu0 0.0
    %807 = vmatprep.subr.mxu0 0.0
    %808 = vmatpush1.msra.mxu0 0.0
    %809 = vmatprep.subr.mxu0 0.0
    %810 = vmatpush1.msra.mxu0 0.0
    %811 = vmatprep.subr.mxu0 0.0
    %812 = vmatpush1.msra.mxu0 0.0
    %813 = vmatprep.mubr.f32.mxu0 0.0
    %814 = vmatmul.mubr.f32.gmra.mrb[0].mxu0 %v747
    %v815 = vpop.f32.mrb[0].mxu0
    %v816 = vadd.f32 0.0, %v815
    %v817 = vpop.f32.mrb[0].mxu0
    %v818 = vadd.f32 0.0, %v817
    %819 = vdwg.mxu0
    %820 = vmatprep.subr.mxu0 %v346
    %821 = vmatpush1.msra.mxu0 %v345
    %822 = vmatprep.subr.mxu0 %v350
    %823 = vmatpush1.msra.mxu0 %v349
    %824 = vmatprep.subr.mxu0 %v354
    %825 = vmatpush1.msra.mxu0 %v353
    %826 = vmatprep.subr.mxu0 %v358
    %827 = vmatpush1.msra.mxu0 %v357
    %828 = vmatprep.subr.mxu0 %v362
    %829 = vmatpush1.msra.mxu0 %v361
    %830 = vmatprep.subr.mxu0 %v366
    %831 = vmatpush1.msra.mxu0 %v365
    %832 = vmatprep.subr.mxu0 %v370
    %833 = vmatpush1.msra.mxu0 %v369
    %834 = vmatprep.subr.mxu0 %v374
    %835 = vmatpush1.msra.mxu0 %v373
    %836 = vmatprep.subr.mxu0 %v378
    %837 = vmatpush1.msra.mxu0 %v377
    %838 = vmatprep.subr.mxu0 %v382
    %839 = vmatpush1.msra.mxu0 %v381
    %840 = vmatprep.subr.mxu0 %v386
    %841 = vmatpush1.msra.mxu0 %v385
    %842 = vmatprep.subr.mxu0 %v390
    %843 = vmatpush1.msra.mxu0 %v389
    %844 = vmatprep.subr.mxu0 %v394
    %845 = vmatpush1.msra.mxu0 %v393
    %846 = vmatprep.subr.mxu0 %v398
    %847 = vmatpush1.msra.mxu0 %v397
    %848 = vmatprep.subr.mxu0 %v402
    %849 = vmatpush1.msra.mxu0 %v401
    %850 = vmatprep.subr.mxu0 %v406
    %851 = vmatpush1.msra.mxu0 %v405
    %852 = vmatprep.subr.mxu0 0.0
    %853 = vmatpush1.msra.mxu0 0.0
    %854 = vmatprep.subr.mxu0 0.0
    %855 = vmatpush1.msra.mxu0 0.0
    %856 = vmatprep.subr.mxu0 0.0
    %857 = vmatpush1.msra.mxu0 0.0
    %858 = vmatprep.subr.mxu0 0.0
    %859 = vmatpush1.msra.mxu0 0.0
    %860 = vmatprep.subr.mxu0 0.0
    %861 = vmatpush1.msra.mxu0 0.0
    %862 = vmatprep.subr.mxu0 0.0
    %863 = vmatpush1.msra.mxu0 0.0
    %864 = vmatprep.subr.mxu0 0.0
    %865 = vmatpush1.msra.mxu0 0.0
    %866 = vmatprep.subr.mxu0 0.0
    %867 = vmatpush1.msra.mxu0 0.0
    %868 = vmatprep.subr.mxu0 0.0
    %869 = vmatpush1.msra.mxu0 0.0
    %870 = vmatprep.subr.mxu0 0.0
    %871 = vmatpush1.msra.mxu0 0.0
    %872 = vmatprep.subr.mxu0 0.0
    %873 = vmatpush1.msra.mxu0 0.0
    %874 = vmatprep.subr.mxu0 0.0
    %875 = vmatpush1.msra.mxu0 0.0
    %876 = vmatprep.subr.mxu0 0.0
    %877 = vmatpush1.msra.mxu0 0.0
    %878 = vmatprep.subr.mxu0 0.0
    %879 = vmatpush1.msra.mxu0 0.0
    %880 = vmatprep.subr.mxu0 0.0
    %881 = vmatpush1.msra.mxu0 0.0
    %882 = vmatprep.subr.mxu0 0.0
    %883 = vmatpush1.msra.mxu0 0.0
    %884 = vmatprep.mubr.f32.mxu0 0.0
    %885 = vmatmul.mubr.f32.gmra.mrb[0].mxu0 %v747
    %v886 = vpop.f32.mrb[0].mxu0
    %v887 = vadd.f32 0.0, %v886
    %v888 = vpop.f32.mrb[0].mxu0
    %v889 = vadd.f32 0.0, %v888
    %890 = vdwg.mxu0
    %v891 = vadd.f32 %v196, %v816
    %v892 = vadd.f32 %v198, %v818
    %v893 = vadd.f32 %v309, %v887
    %v894 = vadd.f32 %v311, %v889
    %v895 = vxor.u32 %v891, 2147483648
    %v896 = vmul.f32 %v895, 1.442695
    %v897 = vpow.pop %v896
    %v898 = vadd.f32 %v897, 1.0
    %v899 = vrcp.pop %v898
    %v900 = vmul.f32 1.0, %v899
    %v901 = vxor.u32 %v892, 2147483648
    %v902 = vmul.f32 %v901, 1.442695
    %v903 = vpow.pop %v902
    %v904 = vadd.f32 %v903, 1.0
    %v905 = vrcp.pop %v904
    %v906 = vmul.f32 1.0, %v905
    %v907 = vtanh.pop %v893
    %v908 = vxor.u32 %v894, 2147483648
    %v909 = vmul.f32 %v908, 1.442695
    %v910 = vpow.pop %v909
    %v911 = vadd.f32 %v910, 1.0
    %v912 = vrcp.pop %v911
    %v913 = vmul.f32 1.0, %v912
    %v914 = vmul.f32 %v906, %v745
    %v915 = vmul.f32 %v900, %v907
    %v916 = vadd.f32 %v914, %v915
    %v917 = vtanh.pop %v916
    %v918 = vmul.f32 %v913, %v917
    %919 = vst [vmem:[#allocation7 + $0x10] sm:$0xff] %v918
    %920 = vmatprep.subr.mxu0 %v344
    %921 = vmatpush1.msra.mxu0 %v343
    %922 = vmatprep.subr.mxu0 %v348
    %923 = vmatpush1.msra.mxu0 %v347
    %924 = vmatprep.subr.mxu0 %v352
    %925 = vmatpush1.msra.mxu0 %v351
    %926 = vmatprep.subr.mxu0 %v356
    %927 = vmatpush1.msra.mxu0 %v355
    %928 = vmatprep.subr.mxu0 %v360
    %929 = vmatpush1.msra.mxu0 %v359
    %930 = vmatprep.subr.mxu0 %v364
    %931 = vmatpush1.msra.mxu0 %v363
    %932 = vmatprep.subr.mxu0 %v368
    %933 = vmatpush1.msra.mxu0 %v367
    %934 = vmatprep.subr.mxu0 %v372
    %935 = vmatpush1.msra.mxu0 %v371
    %936 = vmatprep.subr.mxu0 %v376
    %937 = vmatpush1.msra.mxu0 %v375
    %938 = vmatprep.subr.mxu0 %v380
    %939 = vmatpush1.msra.mxu0 %v379
    %940 = vmatprep.subr.mxu0 %v384
    %941 = vmatpush1.msra.mxu0 %v383
    %942 = vmatprep.subr.mxu0 %v388
    %943 = vmatpush1.msra.mxu0 %v387
    %944 = vmatprep.subr.mxu0 %v392
    %945 = vmatpush1.msra.mxu0 %v391
    %946 = vmatprep.subr.mxu0 %v396
    %947 = vmatpush1.msra.mxu0 %v395
    %948 = vmatprep.subr.mxu0 %v400
    %949 = vmatpush1.msra.mxu0 %v399
    %950 = vmatprep.subr.mxu0 %v404
    %951 = vmatpush1.msra.mxu0 %v403
    %952 = vmatprep.subr.mxu0 0.0
    %953 = vmatpush1.msra.mxu0 0.0
    %954 = vmatprep.subr.mxu0 0.0
    %955 = vmatpush1.msra.mxu0 0.0
    %956 = vmatprep.subr.mxu0 0.0
    %957 = vmatpush1.msra.mxu0 0.0
    %958 = vmatprep.subr.mxu0 0.0
    %959 = vmatpush1.msra.mxu0 0.0
    %960 = vmatprep.subr.mxu0 0.0
    %961 = vmatpush1.msra.mxu0 0.0
    %962 = vmatprep.subr.mxu0 0.0
    %963 = vmatpush1.msra.mxu0 0.0
    %964 = vmatprep.subr.mxu0 0.0
    %965 = vmatpush1.msra.mxu0 0.0
    %966 = vmatprep.subr.mxu0 0.0
    %967 = vmatpush1.msra.mxu0 0.0
    %968 = vmatprep.subr.mxu0 0.0
    %969 = vmatpush1.msra.mxu0 0.0
    %970 = vmatprep.subr.mxu0 0.0
    %971 = vmatpush1.msra.mxu0 0.0
    %972 = vmatprep.subr.mxu0 0.0
    %973 = vmatpush1.msra.mxu0 0.0
    %974 = vmatprep.subr.mxu0 0.0
    %975 = vmatpush1.msra.mxu0 0.0
    %976 = vmatprep.subr.mxu0 0.0
    %977 = vmatpush1.msra.mxu0 0.0
    %978 = vmatprep.subr.mxu0 0.0
    %979 = vmatpush1.msra.mxu0 0.0
    %980 = vmatprep.subr.mxu0 0.0
    %981 = vmatpush1.msra.mxu0 0.0
    %982 = vmatprep.subr.mxu0 0.0
    %983 = vmatpush1.msra.mxu0 0.0
    %984 = vmatprep.mubr.f32.mxu0 0.0
    %985 = vmatmul.mubr.f32.gmra.mrb[0].mxu0 %v918
    %v986 = vpop.f32.mrb[0].mxu0
    %v987 = vadd.f32 0.0, %v986
    %v988 = vpop.f32.mrb[0].mxu0
    %v989 = vadd.f32 0.0, %v988
    %990 = vdwg.mxu0
    %991 = vmatprep.subr.mxu0 %v346
    %992 = vmatpush1.msra.mxu0 %v345
    %993 = vmatprep.subr.mxu0 %v350
    %994 = vmatpush1.msra.mxu0 %v349
    %995 = vmatprep.subr.mxu0 %v354
    %996 = vmatpush1.msra.mxu0 %v353
    %997 = vmatprep.subr.mxu0 %v358
    %998 = vmatpush1.msra.mxu0 %v357
    %999 = vmatprep.subr.mxu0 %v362
    %1000 = vmatpush1.msra.mxu0 %v361
    %1001 = vmatprep.subr.mxu0 %v366
    %1002 = vmatpush1.msra.mxu0 %v365
    %1003 = vmatprep.subr.mxu0 %v370
    %1004 = vmatpush1.msra.mxu0 %v369
    %1005 = vmatprep.subr.mxu0 %v374
    %1006 = vmatpush1.msra.mxu0 %v373
    %1007 = vmatprep.subr.mxu0 %v378
    %1008 = vmatpush1.msra.mxu0 %v377
    %1009 = vmatprep.subr.mxu0 %v382
    %1010 = vmatpush1.msra.mxu0 %v381
    %1011 = vmatprep.subr.mxu0 %v386
    %1012 = vmatpush1.msra.mxu0 %v385
    %1013 = vmatprep.subr.mxu0 %v390
    %1014 = vmatpush1.msra.mxu0 %v389
    %1015 = vmatprep.subr.mxu0 %v394
    %1016 = vmatpush1.msra.mxu0 %v393
    %1017 = vmatprep.subr.mxu0 %v398
    %1018 = vmatpush1.msra.mxu0 %v397
    %1019 = vmatprep.subr.mxu0 %v402
    %1020 = vmatpush1.msra.mxu0 %v401
    %1021 = vmatprep.subr.mxu0 %v406
    %1022 = vmatpush1.msra.mxu0 %v405
    %1023 = vmatprep.subr.mxu0 0.0
    %1024 = vmatpush1.msra.mxu0 0.0
    %1025 = vmatprep.subr.mxu0 0.0
    %1026 = vmatpush1.msra.mxu0 0.0
    %1027 = vmatprep.subr.mxu0 0.0
    %1028 = vmatpush1.msra.mxu0 0.0
    %1029 = vmatprep.subr.mxu0 0.0
    %1030 = vmatpush1.msra.mxu0 0.0
    %1031 = vmatprep.subr.mxu0 0.0
    %1032 = vmatpush1.msra.mxu0 0.0
    %1033 = vmatprep.subr.mxu0 0.0
    %1034 = vmatpush1.msra.mxu0 0.0
    %1035 = vmatprep.subr.mxu0 0.0
    %1036 = vmatpush1.msra.mxu0 0.0
    %1037 = vmatprep.subr.mxu0 0.0
    %1038 = vmatpush1.msra.mxu0 0.0
    %1039 = vmatprep.subr.mxu0 0.0
    %1040 = vmatpush1.msra.mxu0 0.0
    %1041 = vmatprep.subr.mxu0 0.0
    %1042 = vmatpush1.msra.mxu0 0.0
    %1043 = vmatprep.subr.mxu0 0.0
    %1044 = vmatpush1.msra.mxu0 0.0
    %1045 = vmatprep.subr.mxu0 0.0
    %1046 = vmatpush1.msra.mxu0 0.0
    %1047 = vmatprep.subr.mxu0 0.0
    %1048 = vmatpush1.msra.mxu0 0.0
    %1049 = vmatprep.subr.mxu0 0.0
    %1050 = vmatpush1.msra.mxu0 0.0
    %1051 = vmatprep.subr.mxu0 0.0
    %1052 = vmatpush1.msra.mxu0 0.0
    %1053 = vmatprep.subr.mxu0 0.0
    %1054 = vmatpush1.msra.mxu0 0.0
    %1055 = vmatprep.mubr.f32.mxu0 0.0
    %1056 = vmatmul.mubr.f32.gmra.mrb[0].mxu0 %v918
    %v1057 = vpop.f32.mrb[0].mxu0
    %v1058 = vadd.f32 0.0, %v1057
    %v1059 = vpop.f32.mrb[0].mxu0
    %v1060 = vadd.f32 0.0, %v1059
    %1061 = vdwg.mxu0
    %v1062 = vadd.f32 %v202, %v987
    %v1063 = vadd.f32 %v204, %v989
    %v1064 = vadd.f32 %v315, %v1058
    %v1065 = vadd.f32 %v317, %v1060
    %v1066 = vxor.u32 %v1062, 2147483648
    %v1067 = vmul.f32 %v1066, 1.442695
    %v1068 = vpow.pop %v1067
    %v1069 = vadd.f32 %v1068, 1.0
    %v1070 = vrcp.pop %v1069
    %v1071 = vmul.f32 1.0, %v1070
    %v1072 = vxor.u32 %v1063, 2147483648
    %v1073 = vmul.f32 %v1072, 1.442695
    %v1074 = vpow.pop %v1073
    %v1075 = vadd.f32 %v1074, 1.0
    %v1076 = vrcp.pop %v1075
    %v1077 = vmul.f32 1.0, %v1076
    %v1078 = vtanh.pop %v1064
    %v1079 = vxor.u32 %v1065, 2147483648
    %v1080 = vmul.f32 %v1079, 1.442695
    %v1081 = vpow.pop %v1080
    %v1082 = vadd.f32 %v1081, 1.0
    %v1083 = vrcp.pop %v1082
    %v1084 = vmul.f32 1.0, %v1083
    %v1085 = vmul.f32 %v1077, %v916
    %v1086 = vmul.f32 %v1071, %v1078
    %v1087 = vadd.f32 %v1085, %v1086
    %v1088 = vtanh.pop %v1087
    %v1089 = vmul.f32 %v1084, %v1088
    %1090 = vst [vmem:[#allocation7 + $0x18] sm:$0xff] %v1089
    %1091 = vmatprep.subr.mxu0 %v344
    %1092 = vmatpush1.msra.mxu0 %v343
    %1093 = vmatprep.subr.mxu0 %v348
    %1094 = vmatpush1.msra.mxu0 %v347
    %1095 = vmatprep.subr.mxu0 %v352
    %1096 = vmatpush1.msra.mxu0 %v351
    %1097 = vmatprep.subr.mxu0 %v356
    %1098 = vmatpush1.msra.mxu0 %v355
    %1099 = vmatprep.subr.mxu0 %v360
    %1100 = vmatpush1.msra.mxu0 %v359
    %1101 = vmatprep.subr.mxu0 %v364
    %1102 = vmatpush1.msra.mxu0 %v363
    %1103 = vmatprep.subr.mxu0 %v368
    %1104 = vmatpush1.msra.mxu0 %v367
    %1105 = vmatprep.subr.mxu0 %v372
    %1106 = vmatpush1.msra.mxu0 %v371
    %1107 = vmatprep.subr.mxu0 %v376
    %1108 = vmatpush1.msra.mxu0 %v375
    %1109 = vmatprep.subr.mxu0 %v380
    %1110 = vmatpush1.msra.mxu0 %v379
    %1111 = vmatprep.subr.mxu0 %v384
    %1112 = vmatpush1.msra.mxu0 %v383
    %1113 = vmatprep.subr.mxu0 %v388
    %1114 = vmatpush1.msra.mxu0 %v387
    %1115 = vmatprep.subr.mxu0 %v392
    %1116 = vmatpush1.msra.mxu0 %v391
    %1117 = vmatprep.subr.mxu0 %v396
    %1118 = vmatpush1.msra.mxu0 %v395
    %1119 = vmatprep.subr.mxu0 %v400
    %1120 = vmatpush1.msra.mxu0 %v399
    %1121 = vmatprep.subr.mxu0 %v404
    %1122 = vmatpush1.msra.mxu0 %v403
    %1123 = vmatprep.subr.mxu0 0.0
    %1124 = vmatpush1.msra.mxu0 0.0
    %1125 = vmatprep.subr.mxu0 0.0
    %1126 = vmatpush1.msra.mxu0 0.0
    %1127 = vmatprep.subr.mxu0 0.0
    %1128 = vmatpush1.msra.mxu0 0.0
    %1129 = vmatprep.subr.mxu0 0.0
    %1130 = vmatpush1.msra.mxu0 0.0
    %1131 = vmatprep.subr.mxu0 0.0
    %1132 = vmatpush1.msra.mxu0 0.0
    %1133 = vmatprep.subr.mxu0 0.0
    %1134 = vmatpush1.msra.mxu0 0.0
    %1135 = vmatprep.subr.mxu0 0.0
    %1136 = vmatpush1.msra.mxu0 0.0
    %1137 = vmatprep.subr.mxu0 0.0
    %1138 = vmatpush1.msra.mxu0 0.0
    %1139 = vmatprep.subr.mxu0 0.0
    %1140 = vmatpush1.msra.mxu0 0.0
    %1141 = vmatprep.subr.mxu0 0.0
    %1142 = vmatpush1.msra.mxu0 0.0
    %1143 = vmatprep.subr.mxu0 0.0
    %1144 = vmatpush1.msra.mxu0 0.0
    %1145 = vmatprep.subr.mxu0 0.0
    %1146 = vmatpush1.msra.mxu0 0.0
    %1147 = vmatprep.subr.mxu0 0.0
    %1148 = vmatpush1.msra.mxu0 0.0
    %1149 = vmatprep.subr.mxu0 0.0
    %1150 = vmatpush1.msra.mxu0 0.0
    %1151 = vmatprep.subr.mxu0 0.0
    %1152 = vmatpush1.msra.mxu0 0.0
    %1153 = vmatprep.subr.mxu0 0.0
    %1154 = vmatpush1.msra.mxu0 0.0
    %1155 = vmatprep.mubr.f32.mxu0 0.0
    %1156 = vmatmul.mubr.f32.gmra.mrb[0].mxu0 %v1089
    %v1157 = vpop.f32.mrb[0].mxu0
    %v1158 = vadd.f32 0.0, %v1157
    %v1159 = vpop.f32.mrb[0].mxu0
    %v1160 = vadd.f32 0.0, %v1159
    %1161 = vdwg.mxu0
    %1162 = vmatprep.subr.mxu0 %v346
    %1163 = vmatpush1.msra.mxu0 %v345
    %1164 = vmatprep.subr.mxu0 %v350
    %1165 = vmatpush1.msra.mxu0 %v349
    %1166 = vmatprep.subr.mxu0 %v354
    %1167 = vmatpush1.msra.mxu0 %v353
    %1168 = vmatprep.subr.mxu0 %v358
    %1169 = vmatpush1.msra.mxu0 %v357
    %1170 = vmatprep.subr.mxu0 %v362
    %1171 = vmatpush1.msra.mxu0 %v361
    %1172 = vmatprep.subr.mxu0 %v366
    %1173 = vmatpush1.msra.mxu0 %v365
    %1174 = vmatprep.subr.mxu0 %v370
    %1175 = vmatpush1.msra.mxu0 %v369
    %1176 = vmatprep.subr.mxu0 %v374
    %1177 = vmatpush1.msra.mxu0 %v373
    %1178 = vmatprep.subr.mxu0 %v378
    %1179 = vmatpush1.msra.mxu0 %v377
    %1180 = vmatprep.subr.mxu0 %v382
    %1181 = vmatpush1.msra.mxu0 %v381
    %1182 = vmatprep.subr.mxu0 %v386
    %1183 = vmatpush1.msra.mxu0 %v385
    %1184 = vmatprep.subr.mxu0 %v390
    %1185 = vmatpush1.msra.mxu0 %v389
    %1186 = vmatprep.subr.mxu0 %v394
    %1187 = vmatpush1.msra.mxu0 %v393
    %1188 = vmatprep.subr.mxu0 %v398
    %1189 = vmatpush1.msra.mxu0 %v397
    %1190 = vmatprep.subr.mxu0 %v402
    %1191 = vmatpush1.msra.mxu0 %v401
    %1192 = vmatprep.subr.mxu0 %v406
    %1193 = vmatpush1.msra.mxu0 %v405
    %1194 = vmatprep.subr.mxu0 0.0
    %1195 = vmatpush1.msra.mxu0 0.0
    %1196 = vmatprep.subr.mxu0 0.0
    %1197 = vmatpush1.msra.mxu0 0.0
    %1198 = vmatprep.subr.mxu0 0.0
    %1199 = vmatpush1.msra.mxu0 0.0
    %1200 = vmatprep.subr.mxu0 0.0
    %1201 = vmatpush1.msra.mxu0 0.0
    %1202 = vmatprep.subr.mxu0 0.0
    %1203 = vmatpush1.msra.mxu0 0.0
    %1204 = vmatprep.subr.mxu0 0.0
    %1205 = vmatpush1.msra.mxu0 0.0
    %1206 = vmatprep.subr.mxu0 0.0
    %1207 = vmatpush1.msra.mxu0 0.0
    %1208 = vmatprep.subr.mxu0 0.0
    %1209 = vmatpush1.msra.mxu0 0.0
    %1210 = vmatprep.subr.mxu0 0.0
    %1211 = vmatpush1.msra.mxu0 0.0
    %1212 = vmatprep.subr.mxu0 0.0
    %1213 = vmatpush1.msra.mxu0 0.0
    %1214 = vmatprep.subr.mxu0 0.0
    %1215 = vmatpush1.msra.mxu0 0.0
    %1216 = vmatprep.subr.mxu0 0.0
    %1217 = vmatpush1.msra.mxu0 0.0
    %1218 = vmatprep.subr.mxu0 0.0
    %1219 = vmatpush1.msra.mxu0 0.0
    %1220 = vmatprep.subr.mxu0 0.0
    %1221 = vmatpush1.msra.mxu0 0.0
    %1222 = vmatprep.subr.mxu0 0.0
    %1223 = vmatpush1.msra.mxu0 0.0
    %1224 = vmatprep.subr.mxu0 0.0
    %1225 = vmatpush1.msra.mxu0 0.0
    %1226 = vmatprep.mubr.f32.mxu0 0.0
    %1227 = vmatmul.mubr.f32.gmra.mrb[0].mxu0 %v1089
    %v1228 = vpop.f32.mrb[0].mxu0
    %v1229 = vadd.f32 0.0, %v1228
    %v1230 = vpop.f32.mrb[0].mxu0
    %v1231 = vadd.f32 0.0, %v1230
    %1232 = vdwg.mxu0
    %v1233 = vadd.f32 %v208, %v1158
    %v1234 = vadd.f32 %v210, %v1160
    %v1235 = vadd.f32 %v321, %v1229
    %v1236 = vadd.f32 %v323, %v1231
    %v1237 = vxor.u32 %v1233, 2147483648
    %v1238 = vmul.f32 %v1237, 1.442695
    %v1239 = vpow.pop %v1238
    %v1240 = vadd.f32 %v1239, 1.0
    %v1241 = vrcp.pop %v1240
    %v1242 = vmul.f32 1.0, %v1241
    %v1243 = vxor.u32 %v1234, 2147483648
    %v1244 = vmul.f32 %v1243, 1.442695
    %v1245 = vpow.pop %v1244
    %v1246 = vadd.f32 %v1245, 1.0
    %v1247 = vrcp.pop %v1246
    %v1248 = vmul.f32 1.0, %v1247
    %v1249 = vtanh.pop %v1235
    %v1250 = vxor.u32 %v1236, 2147483648
    %v1251 = vmul.f32 %v1250, 1.442695
    %v1252 = vpow.pop %v1251
    %v1253 = vadd.f32 %v1252, 1.0
    %v1254 = vrcp.pop %v1253
    %v1255 = vmul.f32 1.0, %v1254
    %v1256 = vmul.f32 %v1248, %v1087
    %v1257 = vmul.f32 %v1242, %v1249
    %v1258 = vadd.f32 %v1256, %v1257
    %v1259 = vtanh.pop %v1258
    %v1260 = vmul.f32 %v1255, %v1259
    %1261 = vst [vmem:[#allocation7 + $0x20] sm:$0xff] %v1260
    %1262 = vmatprep.subr.mxu0 %v344
    %1263 = vmatpush1.msra.mxu0 %v343
    %1264 = vmatprep.subr.mxu0 %v348
    %1265 = vmatpush1.msra.mxu0 %v347
    %1266 = vmatprep.subr.mxu0 %v352
    %1267 = vmatpush1.msra.mxu0 %v351
    %1268 = vmatprep.subr.mxu0 %v356
    %1269 = vmatpush1.msra.mxu0 %v355
    %1270 = vmatprep.subr.mxu0 %v360
    %1271 = vmatpush1.msra.mxu0 %v359
    %1272 = vmatprep.subr.mxu0 %v364
    %1273 = vmatpush1.msra.mxu0 %v363
    %1274 = vmatprep.subr.mxu0 %v368
    %1275 = vmatpush1.msra.mxu0 %v367
    %1276 = vmatprep.subr.mxu0 %v372
    %1277 = vmatpush1.msra.mxu0 %v371
    %1278 = vmatprep.subr.mxu0 %v376
    %1279 = vmatpush1.msra.mxu0 %v375
    %1280 = vmatprep.subr.mxu0 %v380
    %1281 = vmatpush1.msra.mxu0 %v379
    %1282 = vmatprep.subr.mxu0 %v384
    %1283 = vmatpush1.msra.mxu0 %v383
    %1284 = vmatprep.subr.mxu0 %v388
    %1285 = vmatpush1.msra.mxu0 %v387
    %1286 = vmatprep.subr.mxu0 %v392
    %1287 = vmatpush1.msra.mxu0 %v391
    %1288 = vmatprep.subr.mxu0 %v396
    %1289 = vmatpush1.msra.mxu0 %v395
    %1290 = vmatprep.subr.mxu0 %v400
    %1291 = vmatpush1.msra.mxu0 %v399
    %1292 = vmatprep.subr.mxu0 %v404
    %1293 = vmatpush1.msra.mxu0 %v403
    %1294 = vmatprep.subr.mxu0 0.0
    %1295 = vmatpush1.msra.mxu0 0.0
    %1296 = vmatprep.subr.mxu0 0.0
    %1297 = vmatpush1.msra.mxu0 0.0
    %1298 = vmatprep.subr.mxu0 0.0
    %1299 = vmatpush1.msra.mxu0 0.0
    %1300 = vmatprep.subr.mxu0 0.0
    %1301 = vmatpush1.msra.mxu0 0.0
    %1302 = vmatprep.subr.mxu0 0.0
    %1303 = vmatpush1.msra.mxu0 0.0
    %1304 = vmatprep.subr.mxu0 0.0
    %1305 = vmatpush1.msra.mxu0 0.0
    %1306 = vmatprep.subr.mxu0 0.0
    %1307 = vmatpush1.msra.mxu0 0.0
    %1308 = vmatprep.subr.mxu0 0.0
    %1309 = vmatpush1.msra.mxu0 0.0
    %1310 = vmatprep.subr.mxu0 0.0
    %1311 = vmatpush1.msra.mxu0 0.0
    %1312 = vmatprep.subr.mxu0 0.0
    %1313 = vmatpush1.msra.mxu0 0.0
    %1314 = vmatprep.subr.mxu0 0.0
    %1315 = vmatpush1.msra.mxu0 0.0
    %1316 = vmatprep.subr.mxu0 0.0
    %1317 = vmatpush1.msra.mxu0 0.0
    %1318 = vmatprep.subr.mxu0 0.0
    %1319 = vmatpush1.msra.mxu0 0.0
    %1320 = vmatprep.subr.mxu0 0.0
    %1321 = vmatpush1.msra.mxu0 0.0
    %1322 = vmatprep.subr.mxu0 0.0
    %1323 = vmatpush1.msra.mxu0 0.0
    %1324 = vmatprep.subr.mxu0 0.0
    %1325 = vmatpush1.msra.mxu0 0.0
    %1326 = vmatprep.mubr.f32.mxu0 0.0
    %1327 = vmatmul.mubr.f32.gmra.mrb[0].mxu0 %v1260
    %v1328 = vpop.f32.mrb[0].mxu0
    %v1329 = vadd.f32 0.0, %v1328
    %v1330 = vpop.f32.mrb[0].mxu0
    %v1331 = vadd.f32 0.0, %v1330
    %1332 = vdwg.mxu0
    %1333 = vmatprep.subr.mxu0 %v346
    %1334 = vmatpush1.msra.mxu0 %v345
    %1335 = vmatprep.subr.mxu0 %v350
    %1336 = vmatpush1.msra.mxu0 %v349
    %1337 = vmatprep.subr.mxu0 %v354
    %1338 = vmatpush1.msra.mxu0 %v353
    %1339 = vmatprep.subr.mxu0 %v358
    %1340 = vmatpush1.msra.mxu0 %v357
    %1341 = vmatprep.subr.mxu0 %v362
    %1342 = vmatpush1.msra.mxu0 %v361
    %1343 = vmatprep.subr.mxu0 %v366
    %1344 = vmatpush1.msra.mxu0 %v365
    %1345 = vmatprep.subr.mxu0 %v370
    %1346 = vmatpush1.msra.mxu0 %v369
    %1347 = vmatprep.subr.mxu0 %v374
    %1348 = vmatpush1.msra.mxu0 %v373
    %1349 = vmatprep.subr.mxu0 %v378
    %1350 = vmatpush1.msra.mxu0 %v377
    %1351 = vmatprep.subr.mxu0 %v382
    %1352 = vmatpush1.msra.mxu0 %v381
    %1353 = vmatprep.subr.mxu0 %v386
    %1354 = vmatpush1.msra.mxu0 %v385
    %1355 = vmatprep.subr.mxu0 %v390
    %1356 = vmatpush1.msra.mxu0 %v389
    %1357 = vmatprep.subr.mxu0 %v394
    %1358 = vmatpush1.msra.mxu0 %v393
    %1359 = vmatprep.subr.mxu0 %v398
    %1360 = vmatpush1.msra.mxu0 %v397
    %1361 = vmatprep.subr.mxu0 %v402
    %1362 = vmatpush1.msra.mxu0 %v401
    %1363 = vmatprep.subr.mxu0 %v406
    %1364 = vmatpush1.msra.mxu0 %v405
    %1365 = vmatprep.subr.mxu0 0.0
    %1366 = vmatpush1.msra.mxu0 0.0
    %1367 = vmatprep.subr.mxu0 0.0
    %1368 = vmatpush1.msra.mxu0 0.0
    %1369 = vmatprep.subr.mxu0 0.0
    %1370 = vmatpush1.msra.mxu0 0.0
    %1371 = vmatprep.subr.mxu0 0.0
    %1372 = vmatpush1.msra.mxu0 0.0
    %1373 = vmatprep.subr.mxu0 0.0
    %1374 = vmatpush1.msra.mxu0 0.0
    %1375 = vmatprep.subr.mxu0 0.0
    %1376 = vmatpush1.msra.mxu0 0.0
    %1377 = vmatprep.subr.mxu0 0.0
    %1378 = vmatpush1.msra.mxu0 0.0
    %1379 = vmatprep.subr.mxu0 0.0
    %1380 = vmatpush1.msra.mxu0 0.0
    %1381 = vmatprep.subr.mxu0 0.0
    %1382 = vmatpush1.msra.mxu0 0.0
    %1383 = vmatprep.subr.mxu0 0.0
    %1384 = vmatpush1.msra.mxu0 0.0
    %1385 = vmatprep.subr.mxu0 0.0
    %1386 = vmatpush1.msra.mxu0 0.0
    %1387 = vmatprep.subr.mxu0 0.0
    %1388 = vmatpush1.msra.mxu0 0.0
    %1389 = vmatprep.subr.mxu0 0.0
    %1390 = vmatpush1.msra.mxu0 0.0
    %1391 = vmatprep.subr.mxu0 0.0
    %1392 = vmatpush1.msra.mxu0 0.0
    %1393 = vmatprep.subr.mxu0 0.0
    %1394 = vmatpush1.msra.mxu0 0.0
    %1395 = vmatprep.subr.mxu0 0.0
    %1396 = vmatpush1.msra.mxu0 0.0
    %1397 = vmatprep.mubr.f32.mxu0 0.0
    %1398 = vmatmul.mubr.f32.gmra.mrb[0].mxu0 %v1260
    %v1399 = vpop.f32.mrb[0].mxu0
    %v1400 = vadd.f32 0.0, %v1399
    %v1401 = vpop.f32.mrb[0].mxu0
    %v1402 = vadd.f32 0.0, %v1401
    %1403 = vdwg.mxu0
    %v1404 = vadd.f32 %v214, %v1329
    %v1405 = vadd.f32 %v216, %v1331
    %v1406 = vadd.f32 %v327, %v1400
    %v1407 = vadd.f32 %v329, %v1402
    %v1408 = vxor.u32 %v1404, 2147483648
    %v1409 = vmul.f32 %v1408, 1.442695
    %v1410 = vpow.pop %v1409
    %v1411 = vadd.f32 %v1410, 1.0
    %v1412 = vrcp.pop %v1411
    %v1413 = vmul.f32 1.0, %v1412
    %v1414 = vxor.u32 %v1405, 2147483648
    %v1415 = vmul.f32 %v1414, 1.442695
    %v1416 = vpow.pop %v1415
    %v1417 = vadd.f32 %v1416, 1.0
    %v1418 = vrcp.pop %v1417
    %v1419 = vmul.f32 1.0, %v1418
    %v1420 = vtanh.pop %v1406
    %v1421 = vxor.u32 %v1407, 2147483648
    %v1422 = vmul.f32 %v1421, 1.442695
    %v1423 = vpow.pop %v1422
    %v1424 = vadd.f32 %v1423, 1.0
    %v1425 = vrcp.pop %v1424
    %v1426 = vmul.f32 1.0, %v1425
    %v1427 = vmul.f32 %v1419, %v1258
    %v1428 = vmul.f32 %v1413, %v1420
    %v1429 = vadd.f32 %v1427, %v1428
    %v1430 = vtanh.pop %v1429
    %v1431 = vmul.f32 %v1426, %v1430
    %1432 = vst [vmem:[#allocation7 + $0x28] sm:$0xff] %v1431
    %1433 = vmatprep.subr.mxu0 %v344
    %1434 = vmatpush1.msra.mxu0 %v343
    %1435 = vmatprep.subr.mxu0 %v348
    %1436 = vmatpush1.msra.mxu0 %v347
    %1437 = vmatprep.subr.mxu0 %v352
    %1438 = vmatpush1.msra.mxu0 %v351
    %1439 = vmatprep.subr.mxu0 %v356
    %1440 = vmatpush1.msra.mxu0 %v355
    %1441 = vmatprep.subr.mxu0 %v360
    %1442 = vmatpush1.msra.mxu0 %v359
    %1443 = vmatprep.subr.mxu0 %v364
    %1444 = vmatpush1.msra.mxu0 %v363
    %1445 = vmatprep.subr.mxu0 %v368
    %1446 = vmatpush1.msra.mxu0 %v367
    %1447 = vmatprep.subr.mxu0 %v372
    %1448 = vmatpush1.msra.mxu0 %v371
    %1449 = vmatprep.subr.mxu0 %v376
    %1450 = vmatpush1.msra.mxu0 %v375
    %1451 = vmatprep.subr.mxu0 %v380
    %1452 = vmatpush1.msra.mxu0 %v379
    %1453 = vmatprep.subr.mxu0 %v384
    %1454 = vmatpush1.msra.mxu0 %v383
    %1455 = vmatprep.subr.mxu0 %v388
    %1456 = vmatpush1.msra.mxu0 %v387
    %1457 = vmatprep.subr.mxu0 %v392
    %1458 = vmatpush1.msra.mxu0 %v391
    %1459 = vmatprep.subr.mxu0 %v396
    %1460 = vmatpush1.msra.mxu0 %v395
    %1461 = vmatprep.subr.mxu0 %v400
    %1462 = vmatpush1.msra.mxu0 %v399
    %1463 = vmatprep.subr.mxu0 %v404
    %1464 = vmatpush1.msra.mxu0 %v403
    %1465 = vmatprep.subr.mxu0 0.0
    %1466 = vmatpush1.msra.mxu0 0.0
    %1467 = vmatprep.subr.mxu0 0.0
    %1468 = vmatpush1.msra.mxu0 0.0
    %1469 = vmatprep.subr.mxu0 0.0
    %1470 = vmatpush1.msra.mxu0 0.0
    %1471 = vmatprep.subr.mxu0 0.0
    %1472 = vmatpush1.msra.mxu0 0.0
    %1473 = vmatprep.subr.mxu0 0.0
    %1474 = vmatpush1.msra.mxu0 0.0
    %1475 = vmatprep.subr.mxu0 0.0
    %1476 = vmatpush1.msra.mxu0 0.0
    %1477 = vmatprep.subr.mxu0 0.0
    %1478 = vmatpush1.msra.mxu0 0.0
    %1479 = vmatprep.subr.mxu0 0.0
    %1480 = vmatpush1.msra.mxu0 0.0
    %1481 = vmatprep.subr.mxu0 0.0
    %1482 = vmatpush1.msra.mxu0 0.0
    %1483 = vmatprep.subr.mxu0 0.0
    %1484 = vmatpush1.msra.mxu0 0.0
    %1485 = vmatprep.subr.mxu0 0.0
    %1486 = vmatpush1.msra.mxu0 0.0
    %1487 = vmatprep.subr.mxu0 0.0
    %1488 = vmatpush1.msra.mxu0 0.0
    %1489 = vmatprep.subr.mxu0 0.0
    %1490 = vmatpush1.msra.mxu0 0.0
    %1491 = vmatprep.subr.mxu0 0.0
    %1492 = vmatpush1.msra.mxu0 0.0
    %1493 = vmatprep.subr.mxu0 0.0
    %1494 = vmatpush1.msra.mxu0 0.0
    %1495 = vmatprep.subr.mxu0 0.0
    %1496 = vmatpush1.msra.mxu0 0.0
    %1497 = vmatprep.mubr.f32.mxu0 0.0
    %1498 = vmatmul.mubr.f32.gmra.mrb[0].mxu0 %v1431
    %v1499 = vpop.f32.mrb[0].mxu0
    %v1500 = vadd.f32 0.0, %v1499
    %v1501 = vpop.f32.mrb[0].mxu0
    %v1502 = vadd.f32 0.0, %v1501
    %1503 = vdwg.mxu0
    %1504 = vmatprep.subr.mxu0 %v346
    %1505 = vmatpush1.msra.mxu0 %v345
    %1506 = vmatprep.subr.mxu0 %v350
    %1507 = vmatpush1.msra.mxu0 %v349
    %1508 = vmatprep.subr.mxu0 %v354
    %1509 = vmatpush1.msra.mxu0 %v353
    %1510 = vmatprep.subr.mxu0 %v358
    %1511 = vmatpush1.msra.mxu0 %v357
    %1512 = vmatprep.subr.mxu0 %v362
    %1513 = vmatpush1.msra.mxu0 %v361
    %1514 = vmatprep.subr.mxu0 %v366
    %1515 = vmatpush1.msra.mxu0 %v365
    %1516 = vmatprep.subr.mxu0 %v370
    %1517 = vmatpush1.msra.mxu0 %v369
    %1518 = vmatprep.subr.mxu0 %v374
    %1519 = vmatpush1.msra.mxu0 %v373
    %1520 = vmatprep.subr.mxu0 %v378
    %1521 = vmatpush1.msra.mxu0 %v377
    %1522 = vmatprep.subr.mxu0 %v382
    %1523 = vmatpush1.msra.mxu0 %v381
    %1524 = vmatprep.subr.mxu0 %v386
    %1525 = vmatpush1.msra.mxu0 %v385
    %1526 = vmatprep.subr.mxu0 %v390
    %1527 = vmatpush1.msra.mxu0 %v389
    %1528 = vmatprep.subr.mxu0 %v394
    %1529 = vmatpush1.msra.mxu0 %v393
    %1530 = vmatprep.subr.mxu0 %v398
    %1531 = vmatpush1.msra.mxu0 %v397
    %1532 = vmatprep.subr.mxu0 %v402
    %1533 = vmatpush1.msra.mxu0 %v401
    %1534 = vmatprep.subr.mxu0 %v406
    %1535 = vmatpush1.msra.mxu0 %v405
    %1536 = vmatprep.subr.mxu0 0.0
    %1537 = vmatpush1.msra.mxu0 0.0
    %1538 = vmatprep.subr.mxu0 0.0
    %1539 = vmatpush1.msra.mxu0 0.0
    %1540 = vmatprep.subr.mxu0 0.0
    %1541 = vmatpush1.msra.mxu0 0.0
    %1542 = vmatprep.subr.mxu0 0.0
    %1543 = vmatpush1.msra.mxu0 0.0
    %1544 = vmatprep.subr.mxu0 0.0
    %1545 = vmatpush1.msra.mxu0 0.0
    %1546 = vmatprep.subr.mxu0 0.0
    %1547 = vmatpush1.msra.mxu0 0.0
    %1548 = vmatprep.subr.mxu0 0.0
    %1549 = vmatpush1.msra.mxu0 0.0
    %1550 = vmatprep.subr.mxu0 0.0
    %1551 = vmatpush1.msra.mxu0 0.0
    %1552 = vmatprep.subr.mxu0 0.0
    %1553 = vmatpush1.msra.mxu0 0.0
    %1554 = vmatprep.subr.mxu0 0.0
    %1555 = vmatpush1.msra.mxu0 0.0
    %1556 = vmatprep.subr.mxu0 0.0
    %1557 = vmatpush1.msra.mxu0 0.0
    %1558 = vmatprep.subr.mxu0 0.0
    %1559 = vmatpush1.msra.mxu0 0.0
    %1560 = vmatprep.subr.mxu0 0.0
    %1561 = vmatpush1.msra.mxu0 0.0
    %1562 = vmatprep.subr.mxu0 0.0
    %1563 = vmatpush1.msra.mxu0 0.0
    %1564 = vmatprep.subr.mxu0 0.0
    %1565 = vmatpush1.msra.mxu0 0.0
    %1566 = vmatprep.subr.mxu0 0.0
    %1567 = vmatpush1.msra.mxu0 0.0
    %1568 = vmatprep.mubr.f32.mxu0 0.0
    %1569 = vmatmul.mubr.f32.gmra.mrb[0].mxu0 %v1431
    %v1570 = vpop.f32.mrb[0].mxu0
    %v1571 = vadd.f32 0.0, %v1570
    %v1572 = vpop.f32.mrb[0].mxu0
    %v1573 = vadd.f32 0.0, %v1572
    %1574 = vdwg.mxu0
    %v1575 = vadd.f32 %v220, %v1500
    %v1576 = vadd.f32 %v222, %v1502
    %v1577 = vadd.f32 %v333, %v1571
    %v1578 = vadd.f32 %v335, %v1573
    %v1579 = vxor.u32 %v1575, 2147483648
    %v1580 = vmul.f32 %v1579, 1.442695
    %v1581 = vpow.pop %v1580
    %v1582 = vadd.f32 %v1581, 1.0
    %v1583 = vrcp.pop %v1582
    %v1584 = vmul.f32 1.0, %v1583
    %v1585 = vxor.u32 %v1576, 2147483648
    %v1586 = vmul.f32 %v1585, 1.442695
    %v1587 = vpow.pop %v1586
    %v1588 = vadd.f32 %v1587, 1.0
    %v1589 = vrcp.pop %v1588
    %v1590 = vmul.f32 1.0, %v1589
    %v1591 = vtanh.pop %v1577
    %v1592 = vxor.u32 %v1578, 2147483648
    %v1593 = vmul.f32 %v1592, 1.442695
    %v1594 = vpow.pop %v1593
    %v1595 = vadd.f32 %v1594, 1.0
    %v1596 = vrcp.pop %v1595
    %v1597 = vmul.f32 1.0, %v1596
    %v1598 = vmul.f32 %v1590, %v1429
    %v1599 = vmul.f32 %v1584, %v1591
    %v1600 = vadd.f32 %v1598, %v1599
    %v1601 = vtanh.pop %v1600
    %v1602 = vmul.f32 %v1597, %v1601
    %1603 = vst [vmem:[#allocation7 + $0x30] sm:$0xff] %v1602
    %1604 = vmatprep.subr.mxu0 %v344
    %1605 = vmatpush1.msra.mxu0 %v343
    %1606 = vmatprep.subr.mxu0 %v348
    %1607 = vmatpush1.msra.mxu0 %v347
    %1608 = vmatprep.subr.mxu0 %v352
    %1609 = vmatpush1.msra.mxu0 %v351
    %1610 = vmatprep.subr.mxu0 %v356
    %1611 = vmatpush1.msra.mxu0 %v355
    %1612 = vmatprep.subr.mxu0 %v360
    %1613 = vmatpush1.msra.mxu0 %v359
    %1614 = vmatprep.subr.mxu0 %v364
    %1615 = vmatpush1.msra.mxu0 %v363
    %1616 = vmatprep.subr.mxu0 %v368
    %1617 = vmatpush1.msra.mxu0 %v367
    %1618 = vmatprep.subr.mxu0 %v372
    %1619 = vmatpush1.msra.mxu0 %v371
    %1620 = vmatprep.subr.mxu0 %v376
    %1621 = vmatpush1.msra.mxu0 %v375
    %1622 = vmatprep.subr.mxu0 %v380
    %1623 = vmatpush1.msra.mxu0 %v379
    %1624 = vmatprep.subr.mxu0 %v384
    %1625 = vmatpush1.msra.mxu0 %v383
    %1626 = vmatprep.subr.mxu0 %v388
    %1627 = vmatpush1.msra.mxu0 %v387
    %1628 = vmatprep.subr.mxu0 %v392
    %1629 = vmatpush1.msra.mxu0 %v391
    %1630 = vmatprep.subr.mxu0 %v396
    %1631 = vmatpush1.msra.mxu0 %v395
    %1632 = vmatprep.subr.mxu0 %v400
    %1633 = vmatpush1.msra.mxu0 %v399
    %1634 = vmatprep.subr.mxu0 %v404
    %1635 = vmatpush1.msra.mxu0 %v403
    %1636 = vmatprep.subr.mxu0 0.0
    %1637 = vmatpush1.msra.mxu0 0.0
    %1638 = vmatprep.subr.mxu0 0.0
    %1639 = vmatpush1.msra.mxu0 0.0
    %1640 = vmatprep.subr.mxu0 0.0
    %1641 = vmatpush1.msra.mxu0 0.0
    %1642 = vmatprep.subr.mxu0 0.0
    %1643 = vmatpush1.msra.mxu0 0.0
    %1644 = vmatprep.subr.mxu0 0.0
    %1645 = vmatpush1.msra.mxu0 0.0
    %1646 = vmatprep.subr.mxu0 0.0
    %1647 = vmatpush1.msra.mxu0 0.0
    %1648 = vmatprep.subr.mxu0 0.0
    %1649 = vmatpush1.msra.mxu0 0.0
    %1650 = vmatprep.subr.mxu0 0.0
    %1651 = vmatpush1.msra.mxu0 0.0
    %1652 = vmatprep.subr.mxu0 0.0
    %1653 = vmatpush1.msra.mxu0 0.0
    %1654 = vmatprep.subr.mxu0 0.0
    %1655 = vmatpush1.msra.mxu0 0.0
    %1656 = vmatprep.subr.mxu0 0.0
    %1657 = vmatpush1.msra.mxu0 0.0
    %1658 = vmatprep.subr.mxu0 0.0
    %1659 = vmatpush1.msra.mxu0 0.0
    %1660 = vmatprep.subr.mxu0 0.0
    %1661 = vmatpush1.msra.mxu0 0.0
    %1662 = vmatprep.subr.mxu0 0.0
    %1663 = vmatpush1.msra.mxu0 0.0
    %1664 = vmatprep.subr.mxu0 0.0
    %1665 = vmatpush1.msra.mxu0 0.0
    %1666 = vmatprep.subr.mxu0 0.0
    %1667 = vmatpush1.msra.mxu0 0.0
    %1668 = vmatprep.mubr.f32.mxu0 0.0
    %1669 = vmatmul.mubr.f32.gmra.mrb[0].mxu0 %v1602
    %v1670 = vpop.f32.mrb[0].mxu0
    %v1671 = vadd.f32 0.0, %v1670
    %v1672 = vpop.f32.mrb[0].mxu0
    %v1673 = vadd.f32 0.0, %v1672
    %1674 = vdwg.mxu0
    %1675 = vmatprep.subr.mxu0 %v346
    %1676 = vmatpush1.msra.mxu0 %v345
    %1677 = vmatprep.subr.mxu0 %v350
    %1678 = vmatpush1.msra.mxu0 %v349
    %1679 = vmatprep.subr.mxu0 %v354
    %1680 = vmatpush1.msra.mxu0 %v353
    %1681 = vmatprep.subr.mxu0 %v358
    %1682 = vmatpush1.msra.mxu0 %v357
    %1683 = vmatprep.subr.mxu0 %v362
    %1684 = vmatpush1.msra.mxu0 %v361
    %1685 = vmatprep.subr.mxu0 %v366
    %1686 = vmatpush1.msra.mxu0 %v365
    %1687 = vmatprep.subr.mxu0 %v370
    %1688 = vmatpush1.msra.mxu0 %v369
    %1689 = vmatprep.subr.mxu0 %v374
    %1690 = vmatpush1.msra.mxu0 %v373
    %1691 = vmatprep.subr.mxu0 %v378
    %1692 = vmatpush1.msra.mxu0 %v377
    %1693 = vmatprep.subr.mxu0 %v382
    %1694 = vmatpush1.msra.mxu0 %v381
    %1695 = vmatprep.subr.mxu0 %v386
    %1696 = vmatpush1.msra.mxu0 %v385
    %1697 = vmatprep.subr.mxu0 %v390
    %1698 = vmatpush1.msra.mxu0 %v389
    %1699 = vmatprep.subr.mxu0 %v394
    %1700 = vmatpush1.msra.mxu0 %v393
    %1701 = vmatprep.subr.mxu0 %v398
    %1702 = vmatpush1.msra.mxu0 %v397
    %1703 = vmatprep.subr.mxu0 %v402
    %1704 = vmatpush1.msra.mxu0 %v401
    %1705 = vmatprep.subr.mxu0 %v406
    %1706 = vmatpush1.msra.mxu0 %v405
    %1707 = vmatprep.subr.mxu0 0.0
    %1708 = vmatpush1.msra.mxu0 0.0
    %1709 = vmatprep.subr.mxu0 0.0
    %1710 = vmatpush1.msra.mxu0 0.0
    %1711 = vmatprep.subr.mxu0 0.0
    %1712 = vmatpush1.msra.mxu0 0.0
    %1713 = vmatprep.subr.mxu0 0.0
    %1714 = vmatpush1.msra.mxu0 0.0
    %1715 = vmatprep.subr.mxu0 0.0
    %1716 = vmatpush1.msra.mxu0 0.0
    %1717 = vmatprep.subr.mxu0 0.0
    %1718 = vmatpush1.msra.mxu0 0.0
    %1719 = vmatprep.subr.mxu0 0.0
    %1720 = vmatpush1.msra.mxu0 0.0
    %1721 = vmatprep.subr.mxu0 0.0
    %1722 = vmatpush1.msra.mxu0 0.0
    %1723 = vmatprep.subr.mxu0 0.0
    %1724 = vmatpush1.msra.mxu0 0.0
    %1725 = vmatprep.subr.mxu0 0.0
    %1726 = vmatpush1.msra.mxu0 0.0
    %1727 = vmatprep.subr.mxu0 0.0
    %1728 = vmatpush1.msra.mxu0 0.0
    %1729 = vmatprep.subr.mxu0 0.0
    %1730 = vmatpush1.msra.mxu0 0.0
    %1731 = vmatprep.subr.mxu0 0.0
    %1732 = vmatpush1.msra.mxu0 0.0
    %1733 = vmatprep.subr.mxu0 0.0
    %1734 = vmatpush1.msra.mxu0 0.0
    %1735 = vmatprep.subr.mxu0 0.0
    %1736 = vmatpush1.msra.mxu0 0.0
    %1737 = vmatprep.subr.mxu0 0.0
    %1738 = vmatpush1.msra.mxu0 0.0
    %1739 = vmatprep.mubr.f32.mxu0 0.0
    %1740 = vmatmul.mubr.f32.gmra.mrb[0].mxu0 %v1602
    %v1741 = vpop.f32.mrb[0].mxu0
    %v1742 = vadd.f32 0.0, %v1741
    %v1743 = vpop.f32.mrb[0].mxu0
    %v1744 = vadd.f32 0.0, %v1743
    %1745 = vdwg.mxu0
    %v1746 = vadd.f32 %v226, %v1671
    %v1747 = vadd.f32 %v228, %v1673
    %v1748 = vadd.f32 %v339, %v1742
    %v1749 = vadd.f32 %v341, %v1744
    %v1750 = vxor.u32 %v1746, 2147483648
    %v1751 = vmul.f32 %v1750, 1.442695
    %v1752 = vpow.pop %v1751
    %v1753 = vadd.f32 %v1752, 1.0
    %v1754 = vrcp.pop %v1753
    %v1755 = vmul.f32 1.0, %v1754
    %v1756 = vxor.u32 %v1747, 2147483648
    %v1757 = vmul.f32 %v1756, 1.442695
    %v1758 = vpow.pop %v1757
    %v1759 = vadd.f32 %v1758, 1.0
    %v1760 = vrcp.pop %v1759
    %v1761 = vmul.f32 1.0, %v1760
    %v1762 = vtanh.pop %v1748
    %v1763 = vxor.u32 %v1749, 2147483648
    %v1764 = vmul.f32 %v1763, 1.442695
    %v1765 = vpow.pop %v1764
    %v1766 = vadd.f32 %v1765, 1.0
    %v1767 = vrcp.pop %v1766
    %v1768 = vmul.f32 1.0, %v1767
    %v1769 = vmul.f32 %v1761, %v1600
    %v1770 = vmul.f32 %v1755, %v1762
    %v1771 = vadd.f32 %v1769, %v1770
    %v1772 = vtanh.pop %v1771
    %v1773 = vmul.f32 %v1768, %v1772
    %1774 = vst [vmem:[#allocation7 + $0x38] sm:$0xff] %v1773
    // Predicated region
    $region26: #{tpu_custom_call.1} parent=1 // pred_check
      _
    $region27: #{tpu_custom_call.1} parent=1 // pred_check_branch
      %1776 = sbr.rel (0) target = $region29
    $region28: #{tpu_custom_call.1} parent=1 // pred_region
      %s1778 = ssub.s32 1024, 1024
      %1779 = vsyncadd [#allocation4], %s1778
      %s1780 = sshll.u32 [#allocation7], 4
      %s1781 = int_to_ptr.vmem [resolvable:$true] %s1780
      %1786 = dma.vmem_to_hbm [thread:$0]  %s1781, 1024, %s4, [#allocation4], 128, 128, 8
    $region29: #{tpu_custom_call.1} parent=1 // pred_fallthru
      _
    // Predicated region
    $region30: #{tpu_custom_call.1} parent=1 // pred_check
      _
    $region31: #{tpu_custom_call.1} parent=1 // pred_check_branch
      %1788 = sbr.rel (0) target = $region33
    $region32: #{tpu_custom_call.1} parent=1 // pred_region
      %1789 = dma.done [#allocation4], 1024
    $region33: #{tpu_custom_call.1} parent=1 // pred_fallthru
      _
    %1790 = vsyncpa [#allocation3], 1
    %1791 = vsyncpa [#allocation6], 1
    %1792 = vsyncpa [#allocation4], 1

</llo_original>
